<compile_context>
chip_gen: v5e
topology: v5e:2x2
jax: 0.10.0
libtpu: 0.0.40
codegen_flags: <defaults>
</compile_context>

<pallas_src>
import functools

import jax
import jax.numpy as jnp
from jax.experimental import pallas as pl
from jax.experimental.pallas import tpu as pltpu


def _round_up(n, m):
    return ((n + m - 1) // m) * m


# ---------------------------------------------------------------------------
# Kernel 1: the huge first Linear (D -> 512) + bias + LeakyReLU(0.2).
#
# grid = (J, K):
#   * J tiles the 512 output columns ("parallel"; on v7x both TensorCores
#     stream disjoint column stripes of w1 -> ~2x per-TC HBM bandwidth).
#   * K tiles the input-feature (reduction) dimension ("arbitrary", last).
# Only w1 is big; it is laid out column-stripe-major (J, D_pad, tj) so every
# (tk, tj) block is a single contiguous multi-MB DMA.  x is streamed in small
# per-K blocks.  The output block (B_pad, tj) stays resident across K and is
# used directly as the f32 accumulator.
# ---------------------------------------------------------------------------
def _fc1_kernel(x_ref, w1_ref, b1_ref, h1_ref):
    k = pl.program_id(1)
    nk = pl.num_programs(1)

    @pl.when(k == 0)
    def _():
        h1_ref[...] = jnp.zeros_like(h1_ref)

    w1_blk = w1_ref[0]                                     # (tk, tj) contiguous block
    x_blk = x_ref[...].astype(w1_blk.dtype)                # (B_pad, tk) streamed block
    h1_ref[...] += jnp.dot(x_blk, w1_blk,
                           preferred_element_type=jnp.float32)

    @pl.when(k == nk - 1)
    def _():
        h = h1_ref[...] + b1_ref[...]                      # bias (1, tj) broadcasts
        h1_ref[...] = jnp.where(h >= 0, h, 0.2 * h)        # LeakyReLU(0.2)


def _tail_kernel(h1_ref, w2_ref, b2_ref, w3_ref, b3_ref, o_ref):
    """Tiny tail: (B,512)->(B,256)->LeakyReLU->(B,1)->Sigmoid, all in VMEM."""
    h2 = jnp.dot(h1_ref[...], w2_ref[...],
                 preferred_element_type=jnp.float32) + b2_ref[...]
    h2 = jnp.where(h2 >= 0, h2, 0.2 * h2)                  # LeakyReLU(0.2)
    z = jnp.dot(h2, w3_ref[...],
                preferred_element_type=jnp.float32) + b3_ref[...]
    o_ref[...] = 1.0 / (1.0 + jnp.exp(-z))                 # Sigmoid


def prepare_params(params, *, tk=8192, tj=256, stream_dtype=jnp.float32):
    """One-time weight prep (run once at init / param-load, NOT per call).

    * Zero-pads w1's reduction dim to a multiple of the K tile (exact for a
      reduction: padded x columns are zero too), so the per-call path never
      copies the huge weight.
    * Re-lays w1 out column-stripe-major as (J, D_pad, tj) so each streamed
      (tk, tj) block is one contiguous HBM DMA.
    * Optionally downcasts the streamed weight (e.g. bfloat16) to halve the
      dominant HBM stream; the kernel still accumulates in f32.
    Returns (prepped_params, tk_effective, tj).
    """
    w1, b1, w2, b2, w3, b3 = params
    D, H1 = w1.shape
    assert H1 % tj == 0
    J = H1 // tj

    tk = min(tk, _round_up(D, 128))          # never larger than (aligned) D itself
    D_pad = _round_up(D, tk)                 # zero-pad reduction dim (exact)

    w1_p = jnp.pad(w1, ((0, D_pad - D), (0, 0)))
    # (D_pad, H1) -> (J, D_pad, tj): stripe j holds output columns [j*tj, (j+1)*tj).
    w1_s = jnp.transpose(w1_p.reshape(D_pad, J, tj), (1, 0, 2))
    w1_s = w1_s.astype(stream_dtype)

    return (w1_s, b1, w2, b2, w3, b3), tk, tj


@functools.partial(jax.jit, static_argnames=("tk", "tj"))
def discriminator_forward(x, prepped, *, tk, tj):
    """x: (B, C, H, W) float32.  Returns (B, 1) float32 in [0, 1]."""
    w1_s, b1, w2, b2, w3, b3 = prepped
    B = x.shape[0]
    x2d = x.reshape(B, -1).astype(jnp.float32)             # matches x.view(B, -1)
    D = x2d.shape[1]

    J, D_pad, tj_w = w1_s.shape
    assert tj_w == tj and D_pad % tk == 0 and D <= D_pad
    H1 = J * tj                                            # 512

    B_pad = _round_up(max(B, 8), 8)                        # sublane-aligned batch
    # x is tiny (B x D x 4B); padding it per call is negligible vs the w1 stream.
    x_p = jnp.pad(x2d, ((0, B_pad - B), (0, D_pad - D)))

    grid = (J, D_pad // tk)                                # (parallel J, arbitrary K)

    h1 = pl.pallas_call(
        _fc1_kernel,
        out_shape=jax.ShapeDtypeStruct((B_pad, H1), jnp.float32),
        grid=grid,
        in_specs=[
            # x: small per-K streamed block (no wasted double-buffered residency).
            pl.BlockSpec((B_pad, tk), lambda j, k: (0, k)),
            # w1: the dominant stream; each (tk, tj) block is contiguous in HBM.
            pl.BlockSpec((1, tk, tj), lambda j, k: (j, k, 0)),
            # b1: per-column-tile slice.
            pl.BlockSpec((1, tj), lambda j, k: (0, j)),
        ],
        out_specs=pl.BlockSpec((B_pad, tj), lambda j, k: (0, j)),
        compiler_params=pltpu.CompilerParams(
            dimension_semantics=("parallel", "arbitrary"),
            # ~16.6 MB used at the defaults; 48 MiB leaves room for larger tk
            # sweeps while staying under v7x's 64 MiB per-TC VMEM.
            vmem_limit_bytes=48 * 1024 * 1024,
        ),
    )(x_p, w1_s, b1)

    out = pl.pallas_call(
        _tail_kernel,
        out_shape=jax.ShapeDtypeStruct((B_pad, 1), jnp.float32),
        in_specs=[pl.BlockSpec(memory_space=pltpu.MemorySpace.VMEM)] * 5,
        out_specs=pl.BlockSpec(memory_space=pltpu.MemorySpace.VMEM),
    )(h1, w2, b2, w3, b3)

    return out[:B]


def init_params(key, d_in, h1=512, h2=256, d_out=1):
    """PyTorch-style uniform(+-1/sqrt(fan_in)) init.

    Weights stored as (in_features, out_features); biases as (1, out)."""
    ks = jax.random.split(key, 6)

    def lin(kw, kb, fan_in, fan_out):
        bound = 1.0 / jnp.sqrt(fan_in)
        w = jax.random.uniform(kw, (fan_in, fan_out), jnp.float32,
                               minval=-bound, maxval=bound)
        b = jax.random.uniform(kb, (1, fan_out), jnp.float32,
                               minval=-bound, maxval=bound)
        return w, b

    w1, b1 = lin(ks[0], ks[1], d_in, h1)
    w2, b2 = lin(ks[2], ks[3], h1, h2)
    w3, b3 = lin(ks[4], ks[5], h2, d_out)
    return (w1, b1, w2, b2, w3, b3)


def reference_forward(x, params):
    """Pure-JAX reference mirroring the PyTorch forward exactly."""
    w1, b1, w2, b2, w3, b3 = params
    h = x.reshape(x.shape[0], -1)
    h = h @ w1 + b1
    h = jnp.where(h >= 0, h, 0.2 * h)
    h = h @ w2 + b2
    h = jnp.where(h >= 0, h, 0.2 * h)
    h = h @ w3 + b3
    return jax.nn.sigmoid(h)


if __name__ == "__main__":
    # Small-scale analog of x_shape = [2, 101, 2001] -> here (4, 16, 16),
    # i.e. D = 1024.  The same kernels handle the real D = 404202: w1 is
    # zero-padded / re-laid-out ONCE in prepare_params, never in the per-call
    # jitted path.
    B, C, H, W = 2, 4, 16, 16
    D = C * H * W

    key = jax.random.PRNGKey(0)
    kx, kp = jax.random.split(key)
    x = jax.random.normal(kx, (B, C, H, W), dtype=jnp.float32)
    params = init_params(kp, D)

    # One-time weight prep (outside the per-call path).  For an extra ~2x on
    # the HBM-bound stream, pass stream_dtype=jnp.bfloat16 (relax tolerances).
    prepped, tk, tj = prepare_params(params)

    out = jax.block_until_ready(discriminator_forward(x, prepped, tk=tk, tj=tj))
    ref = reference_forward(x, params)

    assert out.shape == (B, 1)
    assert jnp.allclose(out, ref, atol=1e-4, rtol=1e-4), (out, ref)

    print("KERNEL_OK")
</pallas_src>

<mosaic_0001>
module attributes {stable_mosaic.version = 11 : i64} {
  func.func @_fc1_kernel(%arg0: i32, %arg1: i32, %arg2: memref<8x1024xf32, #tpu.memory_space<vmem>>, %arg3: memref<1x1024x256xf32, #tpu.memory_space<vmem>>, %arg4: memref<1x256xf32, #tpu.memory_space<vmem>>, %arg5: memref<8x256xf32, #tpu.memory_space<vmem>>) attributes {dimension_semantics = [#tpu.dimension_semantics<parallel>, #tpu.dimension_semantics<arbitrary>], iteration_bounds = array<i64: 2, 1>, scalar_prefetch = 0 : i64, scratch_operands = 0 : i64, tpu.core_type = #tpu.core_type<tc>, window_params = [{transform_indices = @transform_0, window_bounds = array<i64: 8, 1024>}, {transform_indices = @transform_1, window_bounds = array<i64: 1, 1024, 256>}, {transform_indices = @transform_2, window_bounds = array<i64: 1, 256>}, {transform_indices = @transform_3, window_bounds = array<i64: 8, 256>}]} {
    %c0_i32 = arith.constant 0 : i32
    %0 = arith.cmpi eq, %arg1, %c0_i32 : i32
    %1 = arith.extui %0 : i1 to i32
    %c0_i32_0 = arith.constant 0 : i32
    %2 = arith.cmpi ne, %1, %c0_i32_0 : i32
    scf.if %2 {
      %cst_11 = arith.constant 0.000000e+00 : f32
      %13 = vector.broadcast %cst_11 : f32 to vector<8x256xf32>
      %c0_12 = arith.constant 0 : index
      %c0_13 = arith.constant 0 : index
      %14 = vector.load %arg5[%c0_12, %c0_13] : memref<8x256xf32, #tpu.memory_space<vmem>>, vector<8x256xf32>
      tpu.vector_store %arg5[%c0_12, %c0_13], %13 {strides = array<i32>} : memref<8x256xf32, #tpu.memory_space<vmem>>, vector<8x256xf32>,
    } else {
    }
    %c0 = arith.constant 0 : index
    %c0_1 = arith.constant 0 : index
    %c0_2 = arith.constant 0 : index
    %3 = vector.load %arg3[%c0, %c0_1, %c0_2] : memref<1x1024x256xf32, #tpu.memory_space<vmem>>, vector<1x1024x256xf32>
    %4 = vector.shape_cast %3 : vector<1x1024x256xf32> to vector<1024x256xf32>
    %c0_3 = arith.constant 0 : index
    %c0_4 = arith.constant 0 : index
    %5 = vector.load %arg2[%c0_3, %c0_4] : memref<8x1024xf32, #tpu.memory_space<vmem>>, vector<8x1024xf32>
    %c0_5 = arith.constant 0 : index
    %c0_6 = arith.constant 0 : index
    %6 = vector.load %arg5[%c0_5, %c0_6] : memref<8x256xf32, #tpu.memory_space<vmem>>, vector<8x256xf32>
    %cst = arith.constant dense<0.000000e+00> : vector<8x256xf32>
    %7 = tpu.matmul %5, %4, %cst {dimension_numbers = #tpu.dot_dimension_numbers<[1], [0], [0], [1], [0, 0, 1, 1], [], []>} : vector<8x1024xf32>, vector<1024x256xf32>, vector<8x256xf32> -> vector<8x256xf32>
    %8 = arith.addf %6, %7 : vector<8x256xf32>
    %c0_7 = arith.constant 0 : index
    %c0_8 = arith.constant 0 : index
    %9 = vector.load %arg5[%c0_7, %c0_8] : memref<8x256xf32, #tpu.memory_space<vmem>>, vector<8x256xf32>
    tpu.vector_store %arg5[%c0_7, %c0_8], %8 {strides = array<i32>} : memref<8x256xf32, #tpu.memory_space<vmem>>, vector<8x256xf32>,
    %c0_i32_9 = arith.constant 0 : i32
    %10 = arith.cmpi eq, %arg1, %c0_i32_9 : i32
    %11 = arith.extui %10 : i1 to i32
    %c0_i32_10 = arith.constant 0 : i32
    %12 = arith.cmpi ne, %11, %c0_i32_10 : i32
    scf.if %12 {
      %c0_11 = arith.constant 0 : index
      %c0_12 = arith.constant 0 : index
      %13 = vector.load %arg5[%c0_11, %c0_12] : memref<8x256xf32, #tpu.memory_space<vmem>>, vector<8x256xf32>
      %c0_13 = arith.constant 0 : index
      %c0_14 = arith.constant 0 : index
      %14 = vector.load %arg4[%c0_13, %c0_14] : memref<1x256xf32, #tpu.memory_space<vmem>>, vector<1x256xf32>
      %15 = vector.broadcast %14 : vector<1x256xf32> to vector<8x256xf32>
      %16 = arith.addf %13, %15 : vector<8x256xf32>
      %cst_15 = arith.constant 0.000000e+00 : f32
      %17 = vector.broadcast %cst_15 : f32 to vector<8x256xf32>
      %18 = arith.cmpf oge, %16, %17 : vector<8x256xf32>
      %cst_16 = arith.constant 2.000000e-01 : f32
      %19 = vector.broadcast %cst_16 : f32 to vector<8x256xf32>
      %20 = arith.mulf %19, %16 : vector<8x256xf32>
      %21 = arith.select %18, %16, %20 : vector<8x256xi1>, vector<8x256xf32>
      %c0_17 = arith.constant 0 : index
      %c0_18 = arith.constant 0 : index
      %22 = vector.load %arg5[%c0_17, %c0_18] : memref<8x256xf32, #tpu.memory_space<vmem>>, vector<8x256xf32>
      tpu.vector_store %arg5[%c0_17, %c0_18], %21 {strides = array<i32>} : memref<8x256xf32, #tpu.memory_space<vmem>>, vector<8x256xf32>,
    } else {
    }
    return
  }
  func.func @transform_0(%arg0: i32, %arg1: i32) -> (i32, i32) {
    %c0_i32 = arith.constant 0 : i32
    %c0_i32_0 = arith.constant 0 : i32
    return %c0_i32, %arg1 : i32, i32
  }
  func.func @transform_1(%arg0: i32, %arg1: i32) -> (i32, i32, i32) {
    %c0_i32 = arith.constant 0 : i32
    %c0_i32_0 = arith.constant 0 : i32
    return %arg0, %arg1, %c0_i32 : i32, i32, i32
  }
  func.func @transform_2(%arg0: i32, %arg1: i32) -> (i32, i32) {
    %c0_i32 = arith.constant 0 : i32
    %c0_i32_0 = arith.constant 0 : i32
    return %c0_i32, %arg0 : i32, i32
  }
  func.func @transform_3(%arg0: i32, %arg1: i32) -> (i32, i32) {
    %c0_i32 = arith.constant 0 : i32
    %c0_i32_0 = arith.constant 0 : i32
    return %c0_i32, %arg0 : i32, i32
  }
}

module attributes {stable_mosaic.version = 11 : i64} {
  func.func @_tail_kernel(%arg0: memref<8x512xf32, #tpu.memory_space<vmem>>, %arg1: memref<512x256xf32, #tpu.memory_space<vmem>>, %arg2: memref<1x256xf32, #tpu.memory_space<vmem>>, %arg3: memref<256x1xf32, #tpu.memory_space<vmem>>, %arg4: memref<1x1xf32, #tpu.memory_space<vmem>>, %arg5: memref<8x1xf32, #tpu.memory_space<vmem>>) attributes {dimension_semantics = [], scalar_prefetch = 0 : i64, scratch_operands = 0 : i64, tpu.core_type = #tpu.core_type<tc>} {
    %c0 = arith.constant 0 : index
    %c0_0 = arith.constant 0 : index
    %0 = vector.load %arg0[%c0, %c0_0] : memref<8x512xf32, #tpu.memory_space<vmem>>, vector<8x512xf32>
    %c0_1 = arith.constant 0 : index
    %c0_2 = arith.constant 0 : index
    %1 = vector.load %arg1[%c0_1, %c0_2] : memref<512x256xf32, #tpu.memory_space<vmem>>, vector<512x256xf32>
    %cst = arith.constant dense<0.000000e+00> : vector<8x256xf32>
    %2 = tpu.matmul %0, %1, %cst {dimension_numbers = #tpu.dot_dimension_numbers<[1], [0], [0], [1], [0, 0, 1, 1], [], []>} : vector<8x512xf32>, vector<512x256xf32>, vector<8x256xf32> -> vector<8x256xf32>
    %c0_3 = arith.constant 0 : index
    %c0_4 = arith.constant 0 : index
    %3 = vector.load %arg2[%c0_3, %c0_4] : memref<1x256xf32, #tpu.memory_space<vmem>>, vector<1x256xf32>
    %4 = vector.broadcast %3 : vector<1x256xf32> to vector<8x256xf32>
    %5 = arith.addf %2, %4 : vector<8x256xf32>
    %cst_5 = arith.constant 0.000000e+00 : f32
    %6 = vector.broadcast %cst_5 : f32 to vector<8x256xf32>
    %7 = arith.cmpf oge, %5, %6 : vector<8x256xf32>
    %cst_6 = arith.constant 2.000000e-01 : f32
    %8 = vector.broadcast %cst_6 : f32 to vector<8x256xf32>
    %9 = arith.mulf %8, %5 : vector<8x256xf32>
    %10 = arith.select %7, %5, %9 : vector<8x256xi1>, vector<8x256xf32>
    %c0_7 = arith.constant 0 : index
    %c0_8 = arith.constant 0 : index
    %11 = vector.load %arg3[%c0_7, %c0_8] : memref<256x1xf32, #tpu.memory_space<vmem>>, vector<256x1xf32>
    %cst_9 = arith.constant dense<0.000000e+00> : vector<8x1xf32>
    %12 = tpu.matmul %10, %11, %cst_9 {dimension_numbers = #tpu.dot_dimension_numbers<[1], [0], [0], [1], [0, 0, 1, 1], [], []>} : vector<8x256xf32>, vector<256x1xf32>, vector<8x1xf32> -> vector<8x1xf32>
    %c0_10 = arith.constant 0 : index
    %c0_11 = arith.constant 0 : index
    %13 = vector.load %arg4[%c0_10, %c0_11] : memref<1x1xf32, #tpu.memory_space<vmem>>, vector<1x1xf32>
    %14 = vector.broadcast %13 : vector<1x1xf32> to vector<8x1xf32>
    %15 = arith.addf %12, %14 : vector<8x1xf32>
    %cst_12 = arith.constant 0.000000e+00 : f32
    %16 = vector.broadcast %cst_12 : f32 to vector<8x1xf32>
    %17 = arith.subf %16, %15 : vector<8x1xf32>
    %18 = math.exp %17 : vector<8x1xf32>
    %cst_13 = arith.constant 1.000000e+00 : f32
    %19 = vector.broadcast %cst_13 : f32 to vector<8x1xf32>
    %20 = arith.addf %19, %18 : vector<8x1xf32>
    %cst_14 = arith.constant 1.000000e+00 : f32
    %21 = vector.broadcast %cst_14 : f32 to vector<8x1xf32>
    %22 = arith.divf %21, %20 : vector<8x1xf32>
    %c0_15 = arith.constant 0 : index
    %c0_16 = arith.constant 0 : index
    %23 = vector.load %arg5[%c0_15, %c0_16] : memref<8x1xf32, #tpu.memory_space<vmem>>, vector<8x1xf32>
    tpu.vector_store %arg5[%c0_15, %c0_16], %22 {strides = array<i32>} : memref<8x1xf32, #tpu.memory_space<vmem>>, vector<8x1xf32>,
    return
  }
}

</mosaic_0001>

<llo_original>
// kernel: discriminator_forward.3
$region0: #{discriminator_forward.3}
  #allocation0 [shape = 'u32[]', space=smem, size = 0x4, offset = 0x4, fixed_abs, tag = 'smem constant byte address 0x4 - core index']
  #allocation1 [shape = 'u32[72,128]{1,0:T(1,128)}', space=vmem, size = 0x9000, scoped, tag = 'internal scratch']
  #allocation2 [shape = 'f32[1,1]{1,0:T(1,128)S(1)}', space=vmem, size = 0x200, scoped, tag = 'scoped memory for discriminator_forward.3']
  %s0 = inlined_call_operand.vmem [shape: f32[8,512], index: 0, kind: input, shape index: {}]
  %s1 = inlined_call_operand.hbm [shape: f32[512,256], index: 1, kind: input, shape index: {}]
  %s2 = inlined_call_operand.hbm [shape: f32[1,256], index: 2, kind: input, shape index: {}]
  %s3 = inlined_call_operand.vmem [shape: f32[256,1], index: 3, kind: input, shape index: {}]
  %s4 = inlined_call_operand.<no memory space> [shape: f32[1,1], index: 4, kind: input, shape index: {}]
  %s5 = inlined_call_operand.vmem [shape: f32[8,1], index: 5, kind: output, shape index: {}]
  %s6 = sld [smem:[#allocation0]]
  $region38: #{discriminator_forward.3} parent=0
    _
  %s8 = ssub.s32 1, %s6
  %s9 = scalar_select 0, %s8, %s6
  %v10 = vstv %s4
  %11 = vst [vmem:[#allocation2] sm:$0x1] %v10
  $region1: #{discriminator_forward.3} parent=0
    #allocation3 [shape = 'u8[524288]{0}', space=vmem, size = 0x80000, scoped, tag = 'input window, operand 1, single buffered']
    #allocation4 [shape = 's32[1]{0}', space=sflag, size = 0x4, scoped, tag = 'scoped memory for discriminator_forward.3']
    #allocation5 [shape = 'u8[1024]{0}', space=vmem, size = 0x400, scoped, tag = 'input window, operand 2, single buffered']
    #allocation6 [shape = 's32[1]{0}', space=sflag, size = 0x4, scoped, tag = 'scoped memory for discriminator_forward.3']
    %12 = vsyncpa [#allocation4], 0
    %13 = vsyncpa [#allocation6], 0
    // Predicated region
    $region2: #{discriminator_forward.3} parent=1 // pred_check
      _
    $region3: #{discriminator_forward.3} parent=1 // pred_check_branch
      %15 = sbr.rel (0) target = $region5
    $region4: #{discriminator_forward.3} parent=1 // pred_region
      _
    $region5: #{discriminator_forward.3} parent=1 // pred_fallthru
      _
    // Predicated region
    $region6: #{discriminator_forward.3} parent=1 // pred_check
      _
    $region7: #{discriminator_forward.3} parent=1 // pred_check_branch
      %17 = sbr.rel (0) target = $region9
    $region8: #{discriminator_forward.3} parent=1 // pred_region
      %19 = vsyncadd [#allocation4], 0
      %s20 = sshll.u32 %s1, 4
      %s21 = int_to_ptr.hbm [resolvable:$true] %s20
      %s22 = sshll.u32 [#allocation3], 4
      %s23 = int_to_ptr.vmem [resolvable:$true] %s22
      %28 = dma.hbm_to_vmem [thread:$0]  %s21, 16384, %s23, [#allocation4], 256, 256, 16
    $region9: #{discriminator_forward.3} parent=1 // pred_fallthru
      _
    // Predicated region
    $region10: #{discriminator_forward.3} parent=1 // pred_check
      _
    $region11: #{discriminator_forward.3} parent=1 // pred_check_branch
      %30 = sbr.rel (0) target = $region13
    $region12: #{discriminator_forward.3} parent=1 // pred_region
      %32 = vsyncadd [#allocation6], 0
      %s34 = sshll.u32 %s2, 4
      %s35 = int_to_ptr.hbm [resolvable:$true] %s34
      %s36 = sshll.u32 [#allocation5], 4
      %s37 = int_to_ptr.vmem [resolvable:$true] %s36
      %39 = dma.hbm_to_vmem [thread:$0]  %s35, 32, %s37, [#allocation6]
    $region13: #{discriminator_forward.3} parent=1 // pred_fallthru
      _
    // Predicated region
    $region14: #{discriminator_forward.3} parent=1 // pred_check
      _
    $region15: #{discriminator_forward.3} parent=1 // pred_check_branch
      %41 = sbr.rel (0) target = $region17
    $region16: #{discriminator_forward.3} parent=1 // pred_region
      _
    $region17: #{discriminator_forward.3} parent=1 // pred_fallthru
      _
    // Predicated region
    $region18: #{discriminator_forward.3} parent=1 // pred_check
      _
    $region19: #{discriminator_forward.3} parent=1 // pred_check_branch
      %43 = sbr.rel (0) target = $region21
    $region20: #{discriminator_forward.3} parent=1 // pred_region
      _
    $region21: #{discriminator_forward.3} parent=1 // pred_fallthru
      _
    // Predicated region
    $region22: #{discriminator_forward.3} parent=1 // pred_check
      _
    $region23: #{discriminator_forward.3} parent=1 // pred_check_branch
      %45 = sbr.rel (0) target = $region25
    $region24: #{discriminator_forward.3} parent=1 // pred_region
      %47 = dma.done [#allocation4], 16384
    $region25: #{discriminator_forward.3} parent=1 // pred_fallthru
      _
    // Predicated region
    $region26: #{discriminator_forward.3} parent=1 // pred_check
      _
    $region27: #{discriminator_forward.3} parent=1 // pred_check_branch
      %49 = sbr.rel (0) target = $region29
    $region28: #{discriminator_forward.3} parent=1 // pred_region
      %51 = dma.done [#allocation6], 32
    $region29: #{discriminator_forward.3} parent=1 // pred_fallthru
      _
    %v52 = vld [vmem:[%s0] sm:$0xff]
    %v53 = vld [vmem:[%s0 + $0x8] sm:$0xff]
    %v54 = vld [vmem:[%s0 + $0x10] sm:$0xff]
    %v55 = vld [vmem:[%s0 + $0x18] sm:$0xff]
    %v56 = vld [vmem:[#allocation3] sm:$0xff]
    %v57 = vld [vmem:[#allocation3 + $0x8] sm:$0xff]
    %v58 = vld [vmem:[#allocation3 + $0x10] sm:$0xff]
    %v59 = vld [vmem:[#allocation3 + $0x18] sm:$0xff]
    %v60 = vld [vmem:[#allocation3 + $0x20] sm:$0xff]
    %v61 = vld [vmem:[#allocation3 + $0x28] sm:$0xff]
    %v62 = vld [vmem:[#allocation3 + $0x30] sm:$0xff]
    %v63 = vld [vmem:[#allocation3 + $0x38] sm:$0xff]
    %v64 = vld [vmem:[#allocation3 + $0x40] sm:$0xff]
    %v65 = vld [vmem:[#allocation3 + $0x48] sm:$0xff]
    %v66 = vld [vmem:[#allocation3 + $0x50] sm:$0xff]
    %v67 = vld [vmem:[#allocation3 + $0x58] sm:$0xff]
    %v68 = vld [vmem:[#allocation3 + $0x60] sm:$0xff]
    %v69 = vld [vmem:[#allocation3 + $0x68] sm:$0xff]
    %v70 = vld [vmem:[#allocation3 + $0x70] sm:$0xff]
    %v71 = vld [vmem:[#allocation3 + $0x78] sm:$0xff]
    %v72 = vld [vmem:[#allocation3 + $0x80] sm:$0xff]
    %v73 = vld [vmem:[#allocation3 + $0x88] sm:$0xff]
    %v74 = vld [vmem:[#allocation3 + $0x90] sm:$0xff]
    %v75 = vld [vmem:[#allocation3 + $0x98] sm:$0xff]
    %v76 = vld [vmem:[#allocation3 + $0xa0] sm:$0xff]
    %v77 = vld [vmem:[#allocation3 + $0xa8] sm:$0xff]
    %v78 = vld [vmem:[#allocation3 + $0xb0] sm:$0xff]
    %v79 = vld [vmem:[#allocation3 + $0xb8] sm:$0xff]
    %v80 = vld [vmem:[#allocation3 + $0xc0] sm:$0xff]
    %v81 = vld [vmem:[#allocation3 + $0xc8] sm:$0xff]
    %v82 = vld [vmem:[#allocation3 + $0xd0] sm:$0xff]
    %v83 = vld [vmem:[#allocation3 + $0xd8] sm:$0xff]
    %v84 = vld [vmem:[#allocation3 + $0xe0] sm:$0xff]
    %v85 = vld [vmem:[#allocation3 + $0xe8] sm:$0xff]
    %v86 = vld [vmem:[#allocation3 + $0xf0] sm:$0xff]
    %v87 = vld [vmem:[#allocation3 + $0xf8] sm:$0xff]
    %v88 = vld [vmem:[#allocation3 + $0x100] sm:$0xff]
    %v89 = vld [vmem:[#allocation3 + $0x108] sm:$0xff]
    %v90 = vld [vmem:[#allocation3 + $0x110] sm:$0xff]
    %v91 = vld [vmem:[#allocation3 + $0x118] sm:$0xff]
    %v92 = vld [vmem:[#allocation3 + $0x120] sm:$0xff]
    %v93 = vld [vmem:[#allocation3 + $0x128] sm:$0xff]
    %v94 = vld [vmem:[#allocation3 + $0x130] sm:$0xff]
    %v95 = vld [vmem:[#allocation3 + $0x138] sm:$0xff]
    %v96 = vld [vmem:[#allocation3 + $0x140] sm:$0xff]
    %v97 = vld [vmem:[#allocation3 + $0x148] sm:$0xff]
    %v98 = vld [vmem:[#allocation3 + $0x150] sm:$0xff]
    %v99 = vld [vmem:[#allocation3 + $0x158] sm:$0xff]
    %v100 = vld [vmem:[#allocation3 + $0x160] sm:$0xff]
    %v101 = vld [vmem:[#allocation3 + $0x168] sm:$0xff]
    %v102 = vld [vmem:[#allocation3 + $0x170] sm:$0xff]
    %v103 = vld [vmem:[#allocation3 + $0x178] sm:$0xff]
    %v104 = vld [vmem:[#allocation3 + $0x180] sm:$0xff]
    %v105 = vld [vmem:[#allocation3 + $0x188] sm:$0xff]
    %v106 = vld [vmem:[#allocation3 + $0x190] sm:$0xff]
    %v107 = vld [vmem:[#allocation3 + $0x198] sm:$0xff]
    %v108 = vld [vmem:[#allocation3 + $0x1a0] sm:$0xff]
    %v109 = vld [vmem:[#allocation3 + $0x1a8] sm:$0xff]
    %v110 = vld [vmem:[#allocation3 + $0x1b0] sm:$0xff]
    %v111 = vld [vmem:[#allocation3 + $0x1b8] sm:$0xff]
    %v112 = vld [vmem:[#allocation3 + $0x1c0] sm:$0xff]
    %v113 = vld [vmem:[#allocation3 + $0x1c8] sm:$0xff]
    %v114 = vld [vmem:[#allocation3 + $0x1d0] sm:$0xff]
    %v115 = vld [vmem:[#allocation3 + $0x1d8] sm:$0xff]
    %v116 = vld [vmem:[#allocation3 + $0x1e0] sm:$0xff]
    %v117 = vld [vmem:[#allocation3 + $0x1e8] sm:$0xff]
    %v118 = vld [vmem:[#allocation3 + $0x1f0] sm:$0xff]
    %v119 = vld [vmem:[#allocation3 + $0x1f8] sm:$0xff]
    %v120 = vld [vmem:[#allocation3 + $0x200] sm:$0xff]
    %v121 = vld [vmem:[#allocation3 + $0x208] sm:$0xff]
    %v122 = vld [vmem:[#allocation3 + $0x210] sm:$0xff]
    %v123 = vld [vmem:[#allocation3 + $0x218] sm:$0xff]
    %v124 = vld [vmem:[#allocation3 + $0x220] sm:$0xff]
    %v125 = vld [vmem:[#allocation3 + $0x228] sm:$0xff]
    %v126 = vld [vmem:[#allocation3 + $0x230] sm:$0xff]
    %v127 = vld [vmem:[#allocation3 + $0x238] sm:$0xff]
    %v128 = vld [vmem:[#allocation3 + $0x240] sm:$0xff]
    %v129 = vld [vmem:[#allocation3 + $0x248] sm:$0xff]
    %v130 = vld [vmem:[#allocation3 + $0x250] sm:$0xff]
    %v131 = vld [vmem:[#allocation3 + $0x258] sm:$0xff]
    %v132 = vld [vmem:[#allocation3 + $0x260] sm:$0xff]
    %v133 = vld [vmem:[#allocation3 + $0x268] sm:$0xff]
    %v134 = vld [vmem:[#allocation3 + $0x270] sm:$0xff]
    %v135 = vld [vmem:[#allocation3 + $0x278] sm:$0xff]
    %v136 = vld [vmem:[#allocation3 + $0x280] sm:$0xff]
    %v137 = vld [vmem:[#allocation3 + $0x288] sm:$0xff]
    %v138 = vld [vmem:[#allocation3 + $0x290] sm:$0xff]
    %v139 = vld [vmem:[#allocation3 + $0x298] sm:$0xff]
    %v140 = vld [vmem:[#allocation3 + $0x2a0] sm:$0xff]
    %v141 = vld [vmem:[#allocation3 + $0x2a8] sm:$0xff]
    %v142 = vld [vmem:[#allocation3 + $0x2b0] sm:$0xff]
    %v143 = vld [vmem:[#allocation3 + $0x2b8] sm:$0xff]
    %v144 = vld [vmem:[#allocation3 + $0x2c0] sm:$0xff]
    %v145 = vld [vmem:[#allocation3 + $0x2c8] sm:$0xff]
    %v146 = vld [vmem:[#allocation3 + $0x2d0] sm:$0xff]
    %v147 = vld [vmem:[#allocation3 + $0x2d8] sm:$0xff]
    %v148 = vld [vmem:[#allocation3 + $0x2e0] sm:$0xff]
    %v149 = vld [vmem:[#allocation3 + $0x2e8] sm:$0xff]
    %v150 = vld [vmem:[#allocation3 + $0x2f0] sm:$0xff]
    %v151 = vld [vmem:[#allocation3 + $0x2f8] sm:$0xff]
    %v152 = vld [vmem:[#allocation3 + $0x300] sm:$0xff]
    %v153 = vld [vmem:[#allocation3 + $0x308] sm:$0xff]
    %v154 = vld [vmem:[#allocation3 + $0x310] sm:$0xff]
    %v155 = vld [vmem:[#allocation3 + $0x318] sm:$0xff]
    %v156 = vld [vmem:[#allocation3 + $0x320] sm:$0xff]
    %v157 = vld [vmem:[#allocation3 + $0x328] sm:$0xff]
    %v158 = vld [vmem:[#allocation3 + $0x330] sm:$0xff]
    %v159 = vld [vmem:[#allocation3 + $0x338] sm:$0xff]
    %v160 = vld [vmem:[#allocation3 + $0x340] sm:$0xff]
    %v161 = vld [vmem:[#allocation3 + $0x348] sm:$0xff]
    %v162 = vld [vmem:[#allocation3 + $0x350] sm:$0xff]
    %v163 = vld [vmem:[#allocation3 + $0x358] sm:$0xff]
    %v164 = vld [vmem:[#allocation3 + $0x360] sm:$0xff]
    %v165 = vld [vmem:[#allocation3 + $0x368] sm:$0xff]
    %v166 = vld [vmem:[#allocation3 + $0x370] sm:$0xff]
    %v167 = vld [vmem:[#allocation3 + $0x378] sm:$0xff]
    %v168 = vld [vmem:[#allocation3 + $0x380] sm:$0xff]
    %v169 = vld [vmem:[#allocation3 + $0x388] sm:$0xff]
    %v170 = vld [vmem:[#allocation3 + $0x390] sm:$0xff]
    %v171 = vld [vmem:[#allocation3 + $0x398] sm:$0xff]
    %v172 = vld [vmem:[#allocation3 + $0x3a0] sm:$0xff]
    %v173 = vld [vmem:[#allocation3 + $0x3a8] sm:$0xff]
    %v174 = vld [vmem:[#allocation3 + $0x3b0] sm:$0xff]
    %v175 = vld [vmem:[#allocation3 + $0x3b8] sm:$0xff]
    %v176 = vld [vmem:[#allocation3 + $0x3c0] sm:$0xff]
    %v177 = vld [vmem:[#allocation3 + $0x3c8] sm:$0xff]
    %v178 = vld [vmem:[#allocation3 + $0x3d0] sm:$0xff]
    %v179 = vld [vmem:[#allocation3 + $0x3d8] sm:$0xff]
    %v180 = vld [vmem:[#allocation3 + $0x3e0] sm:$0xff]
    %v181 = vld [vmem:[#allocation3 + $0x3e8] sm:$0xff]
    %v182 = vld [vmem:[#allocation3 + $0x3f0] sm:$0xff]
    %v183 = vld [vmem:[#allocation3 + $0x3f8] sm:$0xff]
    %v184 = vld [vmem:[#allocation5] sm:$0x3]
    %v186 = vperm.slane %v184, 0
    %v187 = vperm.slane %v184, 1
    %190 = vmatpush.msra.mxu0 %v86
    %191 = vmatpush.msra.mxu0 %v84
    %192 = vmatpush.msra.mxu0 %v82
    %193 = vmatpush.msra.mxu0 %v80
    %194 = vmatpush.msra.mxu0 %v78
    %195 = vmatpush.msra.mxu0 %v76
    %196 = vmatpush.msra.mxu0 %v74
    %197 = vmatpush.msra.mxu0 %v72
    %198 = vmatpush.msra.mxu0 %v70
    %199 = vmatpush.msra.mxu0 %v68
    %200 = vmatpush.msra.mxu0 %v66
    %201 = vmatpush.msra.mxu0 %v64
    %202 = vmatpush.msra.mxu0 %v62
    %203 = vmatpush.msra.mxu0 %v60
    %204 = vmatpush.msra.mxu0 %v58
    %205 = vmatpush.msra.mxu0 %v56
    %206 = vmatmul.f32.gmra.mxu0 %v52
    %v207 = vpop.f32.mrf.mxu0
    %v208 = vadd.f32 %v186, %v207
    %209 = vdwg.mxu0
    %210 = vmatpush.msra.mxu0 %v118
    %211 = vmatpush.msra.mxu0 %v116
    %212 = vmatpush.msra.mxu0 %v114
    %213 = vmatpush.msra.mxu0 %v112
    %214 = vmatpush.msra.mxu0 %v110
    %215 = vmatpush.msra.mxu0 %v108
    %216 = vmatpush.msra.mxu0 %v106
    %217 = vmatpush.msra.mxu0 %v104
    %218 = vmatpush.msra.mxu0 %v102
    %219 = vmatpush.msra.mxu0 %v100
    %220 = vmatpush.msra.mxu0 %v98
    %221 = vmatpush.msra.mxu0 %v96
    %222 = vmatpush.msra.mxu0 %v94
    %223 = vmatpush.msra.mxu0 %v92
    %224 = vmatpush.msra.mxu0 %v90
    %225 = vmatpush.msra.mxu0 %v88
    %226 = vmatmul.f32.gmra.mxu0 %v53
    %v227 = vpop.f32.mrf.mxu0
    %v228 = vadd.f32 %v208, %v227
    %229 = vdwg.mxu0
    %230 = vmatpush.msra.mxu0 %v150
    %231 = vmatpush.msra.mxu0 %v148
    %232 = vmatpush.msra.mxu0 %v146
    %233 = vmatpush.msra.mxu0 %v144
    %234 = vmatpush.msra.mxu0 %v142
    %235 = vmatpush.msra.mxu0 %v140
    %236 = vmatpush.msra.mxu0 %v138
    %237 = vmatpush.msra.mxu0 %v136
    %238 = vmatpush.msra.mxu0 %v134
    %239 = vmatpush.msra.mxu0 %v132
    %240 = vmatpush.msra.mxu0 %v130
    %241 = vmatpush.msra.mxu0 %v128
    %242 = vmatpush.msra.mxu0 %v126
    %243 = vmatpush.msra.mxu0 %v124
    %244 = vmatpush.msra.mxu0 %v122
    %245 = vmatpush.msra.mxu0 %v120
    %246 = vmatmul.f32.gmra.mxu0 %v54
    %v247 = vpop.f32.mrf.mxu0
    %v248 = vadd.f32 %v228, %v247
    %249 = vdwg.mxu0
    %250 = vmatpush.msra.mxu0 %v182
    %251 = vmatpush.msra.mxu0 %v180
    %252 = vmatpush.msra.mxu0 %v178
    %253 = vmatpush.msra.mxu0 %v176
    %254 = vmatpush.msra.mxu0 %v174
    %255 = vmatpush.msra.mxu0 %v172
    %256 = vmatpush.msra.mxu0 %v170
    %257 = vmatpush.msra.mxu0 %v168
    %258 = vmatpush.msra.mxu0 %v166
    %259 = vmatpush.msra.mxu0 %v164
    %260 = vmatpush.msra.mxu0 %v162
    %261 = vmatpush.msra.mxu0 %v160
    %262 = vmatpush.msra.mxu0 %v158
    %263 = vmatpush.msra.mxu0 %v156
    %264 = vmatpush.msra.mxu0 %v154
    %265 = vmatpush.msra.mxu0 %v152
    %266 = vmatmul.f32.gmra.mxu0 %v55
    %v267 = vpop.f32.mrf.mxu0
    %v268 = vadd.f32 %v248, %v267
    %269 = vdwg.mxu0
    %270 = vmatpush.msra.mxu0 %v87
    %271 = vmatpush.msra.mxu0 %v85
    %272 = vmatpush.msra.mxu0 %v83
    %273 = vmatpush.msra.mxu0 %v81
    %274 = vmatpush.msra.mxu0 %v79
    %275 = vmatpush.msra.mxu0 %v77
    %276 = vmatpush.msra.mxu0 %v75
    %277 = vmatpush.msra.mxu0 %v73
    %278 = vmatpush.msra.mxu0 %v71
    %279 = vmatpush.msra.mxu0 %v69
    %280 = vmatpush.msra.mxu0 %v67
    %281 = vmatpush.msra.mxu0 %v65
    %282 = vmatpush.msra.mxu0 %v63
    %283 = vmatpush.msra.mxu0 %v61
    %284 = vmatpush.msra.mxu0 %v59
    %285 = vmatpush.msra.mxu0 %v57
    %286 = vmatmul.f32.gmra.mxu0 %v52
    %v287 = vpop.f32.mrf.mxu0
    %v288 = vadd.f32 %v187, %v287
    %289 = vdwg.mxu0
    %290 = vmatpush.msra.mxu0 %v119
    %291 = vmatpush.msra.mxu0 %v117
    %292 = vmatpush.msra.mxu0 %v115
    %293 = vmatpush.msra.mxu0 %v113
    %294 = vmatpush.msra.mxu0 %v111
    %295 = vmatpush.msra.mxu0 %v109
    %296 = vmatpush.msra.mxu0 %v107
    %297 = vmatpush.msra.mxu0 %v105
    %298 = vmatpush.msra.mxu0 %v103
    %299 = vmatpush.msra.mxu0 %v101
    %300 = vmatpush.msra.mxu0 %v99
    %301 = vmatpush.msra.mxu0 %v97
    %302 = vmatpush.msra.mxu0 %v95
    %303 = vmatpush.msra.mxu0 %v93
    %304 = vmatpush.msra.mxu0 %v91
    %305 = vmatpush.msra.mxu0 %v89
    %306 = vmatmul.f32.gmra.mxu0 %v53
    %v307 = vpop.f32.mrf.mxu0
    %v308 = vadd.f32 %v288, %v307
    %309 = vdwg.mxu0
    %310 = vmatpush.msra.mxu0 %v151
    %311 = vmatpush.msra.mxu0 %v149
    %312 = vmatpush.msra.mxu0 %v147
    %313 = vmatpush.msra.mxu0 %v145
    %314 = vmatpush.msra.mxu0 %v143
    %315 = vmatpush.msra.mxu0 %v141
    %316 = vmatpush.msra.mxu0 %v139
    %317 = vmatpush.msra.mxu0 %v137
    %318 = vmatpush.msra.mxu0 %v135
    %319 = vmatpush.msra.mxu0 %v133
    %320 = vmatpush.msra.mxu0 %v131
    %321 = vmatpush.msra.mxu0 %v129
    %322 = vmatpush.msra.mxu0 %v127
    %323 = vmatpush.msra.mxu0 %v125
    %324 = vmatpush.msra.mxu0 %v123
    %325 = vmatpush.msra.mxu0 %v121
    %326 = vmatmul.f32.gmra.mxu0 %v54
    %v327 = vpop.f32.mrf.mxu0
    %v328 = vadd.f32 %v308, %v327
    %329 = vdwg.mxu0
    %330 = vmatpush.msra.mxu0 %v183
    %331 = vmatpush.msra.mxu0 %v181
    %332 = vmatpush.msra.mxu0 %v179
    %333 = vmatpush.msra.mxu0 %v177
    %334 = vmatpush.msra.mxu0 %v175
    %335 = vmatpush.msra.mxu0 %v173
    %336 = vmatpush.msra.mxu0 %v171
    %337 = vmatpush.msra.mxu0 %v169
    %338 = vmatpush.msra.mxu0 %v167
    %339 = vmatpush.msra.mxu0 %v165
    %340 = vmatpush.msra.mxu0 %v163
    %341 = vmatpush.msra.mxu0 %v161
    %342 = vmatpush.msra.mxu0 %v159
    %343 = vmatpush.msra.mxu0 %v157
    %344 = vmatpush.msra.mxu0 %v155
    %345 = vmatpush.msra.mxu0 %v153
    %346 = vmatmul.f32.gmra.mxu0 %v55
    %v347 = vpop.f32.mrf.mxu0
    %v348 = vadd.f32 %v328, %v347
    %349 = vdwg.mxu0
    %vm350 = vcmp.ge.f32.partialorder %v268, 0.0
    %vm351 = vcmp.ge.f32.partialorder %v348, 0.0
    %v352 = vmul.f32 %v268, 0.2
    %v353 = vmul.f32 %v348, 0.2
    %v354 = vsel %vm350, %v268, %v352
    %v355 = vsel %vm351, %v348, %v353
    %v356 = vld [vmem:[%s3] sm:$0xff]
    %v357 = vld [vmem:[%s3 + $0x8] sm:$0xff]
    %v358 = vld [vmem:[%s3 + $0x10] sm:$0xff]
    %v359 = vld [vmem:[%s3 + $0x18] sm:$0xff]
    %v360 = vld [vmem:[%s3 + $0x20] sm:$0xff]
    %v361 = vld [vmem:[%s3 + $0x28] sm:$0xff]
    %v362 = vld [vmem:[%s3 + $0x30] sm:$0xff]
    %v363 = vld [vmem:[%s3 + $0x38] sm:$0xff]
    %v364 = vld [vmem:[%s3 + $0x40] sm:$0xff]
    %v365 = vld [vmem:[%s3 + $0x48] sm:$0xff]
    %v366 = vld [vmem:[%s3 + $0x50] sm:$0xff]
    %v367 = vld [vmem:[%s3 + $0x58] sm:$0xff]
    %v368 = vld [vmem:[%s3 + $0x60] sm:$0xff]
    %v369 = vld [vmem:[%s3 + $0x68] sm:$0xff]
    %v370 = vld [vmem:[%s3 + $0x70] sm:$0xff]
    %v371 = vld [vmem:[%s3 + $0x78] sm:$0xff]
    %v372 = vld [vmem:[%s3 + $0x80] sm:$0xff]
    %v373 = vld [vmem:[%s3 + $0x88] sm:$0xff]
    %v374 = vld [vmem:[%s3 + $0x90] sm:$0xff]
    %v375 = vld [vmem:[%s3 + $0x98] sm:$0xff]
    %v376 = vld [vmem:[%s3 + $0xa0] sm:$0xff]
    %v377 = vld [vmem:[%s3 + $0xa8] sm:$0xff]
    %v378 = vld [vmem:[%s3 + $0xb0] sm:$0xff]
    %v379 = vld [vmem:[%s3 + $0xb8] sm:$0xff]
    %v380 = vld [vmem:[%s3 + $0xc0] sm:$0xff]
    %v381 = vld [vmem:[%s3 + $0xc8] sm:$0xff]
    %v382 = vld [vmem:[%s3 + $0xd0] sm:$0xff]
    %v383 = vld [vmem:[%s3 + $0xd8] sm:$0xff]
    %v384 = vld [vmem:[%s3 + $0xe0] sm:$0xff]
    %v385 = vld [vmem:[%s3 + $0xe8] sm:$0xff]
    %v386 = vld [vmem:[%s3 + $0xf0] sm:$0xff]
    %v387 = vld [vmem:[%s3 + $0xf8] sm:$0xff]
    %v388 = vld [vmem:[#allocation2] sm:$0x1]
    %v390 = vperm.slane %v388, 0
    %392 = vmatpush.msra.mxu0 %v371
    %393 = vmatpush.msra.mxu0 %v370
    %394 = vmatpush.msra.mxu0 %v369
    %395 = vmatpush.msra.mxu0 %v368
    %396 = vmatpush.msra.mxu0 %v367
    %397 = vmatpush.msra.mxu0 %v366
    %398 = vmatpush.msra.mxu0 %v365
    %399 = vmatpush.msra.mxu0 %v364
    %400 = vmatpush.msra.mxu0 %v363
    %401 = vmatpush.msra.mxu0 %v362
    %402 = vmatpush.msra.mxu0 %v361
    %403 = vmatpush.msra.mxu0 %v360
    %404 = vmatpush.msra.mxu0 %v359
    %405 = vmatpush.msra.mxu0 %v358
    %406 = vmatpush.msra.mxu0 %v357
    %407 = vmatpush.msra.mxu0 %v356
    %408 = vmatmul.f32.gmra.mxu0 %v354
    %v409 = vpop.f32.mrf.mxu0
    %v410 = vadd.f32 %v390, %v409
    %411 = vdwg.mxu0
    %412 = vmatpush.msra.mxu0 %v387
    %413 = vmatpush.msra.mxu0 %v386
    %414 = vmatpush.msra.mxu0 %v385
    %415 = vmatpush.msra.mxu0 %v384
    %416 = vmatpush.msra.mxu0 %v383
    %417 = vmatpush.msra.mxu0 %v382
    %418 = vmatpush.msra.mxu0 %v381
    %419 = vmatpush.msra.mxu0 %v380
    %420 = vmatpush.msra.mxu0 %v379
    %421 = vmatpush.msra.mxu0 %v378
    %422 = vmatpush.msra.mxu0 %v377
    %423 = vmatpush.msra.mxu0 %v376
    %424 = vmatpush.msra.mxu0 %v375
    %425 = vmatpush.msra.mxu0 %v374
    %426 = vmatpush.msra.mxu0 %v373
    %427 = vmatpush.msra.mxu0 %v372
    %428 = vmatmul.f32.gmra.mxu0 %v355
    %v429 = vpop.f32.mrf.mxu0
    %v430 = vadd.f32 %v410, %v429
    %431 = vdwg.mxu0
    %v432 = vsub.f32 0.0, %v430
    %v433 = vmul.f32 %v432, 1.442695
    %v434 = vpow.pop %v433
    %v435 = vadd.f32 %v434, 1.0
    %v436 = vrcp.pop %v435
    %v437 = vmul.f32 %v435, %v436
    %v438 = vsub.f32 1.0, %v437
    %v439 = vmul.f32 %v436, %v438
    %v440 = vadd.f32 %v436, %v439
    %vm441 = vweird.f32 %v435
    %vm442 = vweird.f32 %v436
    %vm443 = vmor %vm441, %vm442
    %v444 = vsel %vm443, %v436, %v440
    %v445 = vand.u32 2147483647, %v435
    %vm446 = vcmp.eq.f32.partialorder %v445, 8.507059e+37
    %v447 = vand.u32 %v435, 2147483648
    %v448 = vor.u32 1.1754944e-38, %v447
    %v449 = vsel %vm446, %v448, %v444
    %v450 = vmul.f32 1.0, %v449
    %vm451 = vcmask 7168
    %452 = vst.msk [vmem:[%s5] sm:$0xff] %vm451, %v450
    // Predicated region
    $region30: #{discriminator_forward.3} parent=1 // pred_check
      _
    $region31: #{discriminator_forward.3} parent=1 // pred_check_branch
      %454 = sbr.rel (0) target = $region33
    $region32: #{discriminator_forward.3} parent=1 // pred_region
      _
    $region33: #{discriminator_forward.3} parent=1 // pred_fallthru
      _
    // Predicated region
    $region34: #{discriminator_forward.3} parent=1 // pred_check
      _
    $region35: #{discriminator_forward.3} parent=1 // pred_check_branch
      %456 = sbr.rel (0) target = $region37
    $region36: #{discriminator_forward.3} parent=1 // pred_region
      _
    $region37: #{discriminator_forward.3} parent=1 // pred_fallthru
      _
    %457 = vsyncpa [#allocation4], 1
    %458 = vsyncpa [#allocation6], 1

// kernel: discriminator_forward.2
$region0: #{discriminator_forward.2}
  #allocation0 [shape = 'u32[]', space=smem, size = 0x4, offset = 0x4, fixed_abs, tag = 'smem constant byte address 0x4 - core index']
  #allocation1 [shape = 'u32[72,128]{1,0:T(1,128)}', space=vmem, size = 0x9000, scoped, tag = 'internal scratch']
  %s0 = inlined_call_operand.vmem [shape: f32[8,1024], index: 0, kind: input, shape index: {}]
  %s1 = inlined_call_operand.hbm [shape: f32[2,1024,256], index: 1, kind: input, shape index: {}]
  %s2 = inlined_call_operand.hbm [shape: f32[1,512], index: 2, kind: input, shape index: {}]
  %s3 = inlined_call_operand.vmem [shape: f32[8,512], index: 3, kind: output, shape index: {}]
  %s4 = sld [smem:[#allocation0]]
  $region61: #{discriminator_forward.2} parent=0
    _
  %s6 = ssub.s32 1, %s4
  %s7 = scalar_select 0, %s6, %s4
  $region1: #{discriminator_forward.2} parent=0
    #allocation2 [shape = 'u8[2097152]{0}', space=vmem, size = 0x200000, scoped, tag = 'input window, operand 1']
    #allocation3 [shape = 's32[2]{0}', space=sflag, size = 0x8, scoped, tag = 'scoped memory for discriminator_forward.2']
    #allocation4 [shape = 'u8[2048]{0}', space=vmem, size = 0x800, scoped, tag = 'input window, operand 2']
    #allocation5 [shape = 's32[2]{0}', space=sflag, size = 0x8, scoped, tag = 'scoped memory for discriminator_forward.2']
    %8 = vsyncpa [#allocation3], 0
    %s9 = scalar_lea.sflag [#allocation3], 1
    %10 = vsyncpa %s9, 0
    %11 = vsyncpa [#allocation5], 0
    %s12 = scalar_lea.sflag [#allocation5], 1
    %13 = vsyncpa %s12, 0
    loop: start=0, step=1, limit=4
    $region2: #{discriminator_forward.2} parent=1 // loop_pre_header
      _
    $region3: #{discriminator_forward.2} parent=1 // loop_header
      %s15 = sphi 0, %s19
      %p16 = scmp.ge.s32.totalorder %s15, 4
      %s22 = sphi 0, %s34
      %s23 = sphi 0, %s30
      %s24 = sphi 0, %s22
      %s25 = sphi 0, %s23
      %s26 = sphi 0, %s24
      %s27 = sphi 0, %s25
      %s37 = sphi 0, %s39
      %s40 = sphi 0, %s37
      %s41 = sphi 0, %s40
      %s57 = sphi 0, %s41
      %s65 = sphi 0, %s67
      %s68 = sphi 0, %s65
      %s69 = sphi 0, %s68
      %s85 = sphi 0, %s69
      %s91 = sphi 0, %s93
      %s94 = sphi 0, %s91
      %s95 = sphi 0, %s94
      %s111 = sphi 0, %s95
      %s117 = sphi 0, %s119
      %s120 = sphi 0, %s117
      %s121 = sphi 0, %s120
      %s137 = sphi 0, %s121
    $region4: #{discriminator_forward.2} parent=1 // loop_header_branch
      %18 = sbr.rel (%p16) target = $region8
    $region5: #{discriminator_forward.2} parent=1 // loop_body
      %s20 = ssub.s32 %s15, 1
      %s21 = ssub.s32 %s15, 2
      %s28 = sadd.s32 1, %s23
      %p29 = scmp.ge.s32.totalorder %s28, 1
      %s30 = scalar_select %p29, 0, %s28
      %s31 = sadd.s32 1, %s22
      %s32 = scalar_select %p29, %s31, %s22
      %p33 = scmp.ge.s32.totalorder %s32, 2
      %s34 = scalar_select %p33, 0, %s32
      %s35 = ssub.s32 %s23, %s30
      %p36 = scmp.eq.s32.totalorder %s35, 0
      %s38 = sadd.s32 %s37, 1
      %s39 = scalar_select %p36, %s37, %s38
      %p42 = pneg %p36
      %p43 = scmp.eq.s32.totalorder %s15, 1
      %p44 = por %p42, %p43
      %p45 = scmp.ne.s32.totalorder %s37, %s40
      %p46 = scmp.eq.s32.totalorder %s15, 0
      %p47 = por %p45, %p46
      %p48 = scmp.ne.s32.totalorder %s37, %s40
      %p49 = scmp.eq.s32.totalorder %s20, 1
      %p50 = por %p48, %p49
      %p51 = scmp.ne.s32.totalorder %s40, %s41
      %p52 = scmp.eq.s32.totalorder %s20, 0
      %p53 = por %p51, %p52
      %p54 = scmp.ne.s32.totalorder %s40, %s41
      %p55 = scmp.eq.s32.totalorder %s21, 1
      %p56 = por %p54, %p55
      %p58 = scmp.ne.s32.totalorder %s41, %s57
      %p59 = scmp.eq.s32.totalorder %s21, 0
      %p60 = por %p58, %p59
      %s61 = ssub.s32 %s22, %s34
      %s62 = ssub.s32 %s23, %s30
      %s63 = sor.u32 %s61, %s62
      %p64 = scmp.eq.s32.totalorder %s63, 0
      %s66 = sadd.s32 %s65, 1
      %s67 = scalar_select %p64, %s65, %s66
      %p70 = pneg %p64
      %p71 = scmp.eq.s32.totalorder %s15, 1
      %p72 = por %p70, %p71
      %p73 = scmp.ne.s32.totalorder %s65, %s68
      %p74 = scmp.eq.s32.totalorder %s15, 0
      %p75 = por %p73, %p74
      %p76 = scmp.ne.s32.totalorder %s65, %s68
      %p77 = scmp.eq.s32.totalorder %s20, 1
      %p78 = por %p76, %p77
      %p79 = scmp.ne.s32.totalorder %s68, %s69
      %p80 = scmp.eq.s32.totalorder %s20, 0
      %p81 = por %p79, %p80
      %p82 = scmp.ne.s32.totalorder %s68, %s69
      %p83 = scmp.eq.s32.totalorder %s21, 1
      %p84 = por %p82, %p83
      %p86 = scmp.ne.s32.totalorder %s69, %s85
      %p87 = scmp.eq.s32.totalorder %s21, 0
      %p88 = por %p86, %p87
      %s89 = ssub.s32 %s22, %s34
      %p90 = scmp.eq.s32.totalorder %s89, 0
      %s92 = sadd.s32 %s91, 1
      %s93 = scalar_select %p90, %s91, %s92
      %p96 = pneg %p90
      %p97 = scmp.eq.s32.totalorder %s15, 1
      %p98 = por %p96, %p97
      %p99 = scmp.ne.s32.totalorder %s91, %s94
      %p100 = scmp.eq.s32.totalorder %s15, 0
      %p101 = por %p99, %p100
      %p102 = scmp.ne.s32.totalorder %s91, %s94
      %p103 = scmp.eq.s32.totalorder %s20, 1
      %p104 = por %p102, %p103
      %p105 = scmp.ne.s32.totalorder %s94, %s95
      %p106 = scmp.eq.s32.totalorder %s20, 0
      %p107 = por %p105, %p106
      %p108 = scmp.ne.s32.totalorder %s94, %s95
      %p109 = scmp.eq.s32.totalorder %s21, 1
      %p110 = por %p108, %p109
      %p112 = scmp.ne.s32.totalorder %s95, %s111
      %p113 = scmp.eq.s32.totalorder %s21, 0
      %p114 = por %p112, %p113
      %s115 = ssub.s32 %s22, %s34
      %p116 = scmp.eq.s32.totalorder %s115, 0
      %s118 = sadd.s32 %s117, 1
      %s119 = scalar_select %p116, %s117, %s118
      %p122 = pneg %p116
      %p123 = scmp.eq.s32.totalorder %s15, 1
      %p124 = por %p122, %p123
      %p125 = scmp.ne.s32.totalorder %s117, %s120
      %p126 = scmp.eq.s32.totalorder %s15, 0
      %p127 = por %p125, %p126
      %p128 = scmp.ne.s32.totalorder %s117, %s120
      %p129 = scmp.eq.s32.totalorder %s20, 1
      %p130 = por %p128, %p129
      %p131 = scmp.ne.s32.totalorder %s120, %s121
      %p132 = scmp.eq.s32.totalorder %s20, 0
      %p133 = por %p131, %p132
      %p134 = scmp.ne.s32.totalorder %s120, %s121
      %p135 = scmp.eq.s32.totalorder %s21, 1
      %p136 = por %p134, %p135
      %p138 = scmp.ne.s32.totalorder %s121, %s137
      %p139 = scmp.eq.s32.totalorder %s21, 0
      %p140 = por %p138, %p139
      %p141 = scmp.le.s32.totalorder 1, %s15
      %p142 = scmp.lt.s32.totalorder %s15, 3
      %p143 = pnand %p141, %p142
      %p144 = pneg %p143
      // Predicated region
      $region9: #{discriminator_forward.2} parent=5 // pred_check
        _
      $region10: #{discriminator_forward.2} parent=5 // pred_check_branch
        %146 = sbr.rel (%p143) target = $region12
      $region11: #{discriminator_forward.2} parent=5 // pred_region
        %s147 = ssub.s32 %s15, 1
        // Predicated region
        $region13: #{discriminator_forward.2} parent=11 // pred_check
          %p148 = pneg %p53
        $region14: #{discriminator_forward.2} parent=11 // pred_check_branch
          %150 = sbr.rel (%p148) target = $region16
        $region15: #{discriminator_forward.2} parent=11 // pred_region
          %s151 = smul.u32 8, %s25
          %p152 = scmp.lt.s32.totalorder %s151, 7
          %s153 = scalar_select %p152, %s151, 7
          %s154 = smul.addr %s153, 8
          %s155 = scalar_lea.vmem %s0, %s154
          %s156 = smul.u32 8, %s25
        $region16: #{discriminator_forward.2} parent=11 // pred_fallthru
          _
      $region12: #{discriminator_forward.2} parent=5 // pred_fallthru
        _
      %p157 = scmp.lt.s32.totalorder %s15, 2
      // Predicated region
      $region17: #{discriminator_forward.2} parent=5 // pred_check
        %p158 = pneg %p157
      $region18: #{discriminator_forward.2} parent=5 // pred_check_branch
        %160 = sbr.rel (%p158) target = $region20
      $region19: #{discriminator_forward.2} parent=5 // pred_region
        // Predicated region
        $region21: #{discriminator_forward.2} parent=19 // pred_check
          %p161 = pneg %p75
        $region22: #{discriminator_forward.2} parent=19 // pred_check_branch
          %163 = sbr.rel (%p161) target = $region24
        $region23: #{discriminator_forward.2} parent=19 // pred_region
          %s164 = sand.u32 %s65, 1
          %s165 = scalar_lea.sflag [#allocation3], %s164
          %s166 = sand.u32 %s65, 1
          %s167 = smul.addr %s166, 2048
          %s168 = scalar_lea.vmem [#allocation2], %s167
          %s169 = smul.u32 128, %s23
          %171 = vsyncadd %s165, 0
          %s172 = smul.addr %s169, 2
          %s173 = smul.addr %s22, 256
          %s174 = sadd.s32 %s172, %s173
          %s175 = smul.addr %s174, 8
          %s176 = scalar_lea.hbm %s1, %s175
          %s177 = sshll.u32 %s176, 4
          %s178 = int_to_ptr.hbm [resolvable:$true] %s177
          %s179 = sshll.u32 %s168, 4
          %s180 = int_to_ptr.vmem [resolvable:$true] %s179
          %185 = dma.hbm_to_vmem [thread:$0]  %s178, 32768, %s180, %s165, 256, 256, 16
        $region24: #{discriminator_forward.2} parent=19 // pred_fallthru
          _
        // Predicated region
        $region25: #{discriminator_forward.2} parent=19 // pred_check
          %p186 = pneg %p101
        $region26: #{discriminator_forward.2} parent=19 // pred_check_branch
          %188 = sbr.rel (%p186) target = $region28
        $region27: #{discriminator_forward.2} parent=19 // pred_region
          %s189 = sand.u32 %s91, 1
          %s190 = scalar_lea.sflag [#allocation5], %s189
          %s191 = sand.u32 %s91, 1
          %s192 = smul.addr %s191, 2
          %s193 = scalar_lea.vmem [#allocation4], %s192
          %s194 = smul.u32 2, %s22
          %196 = vsyncadd %s190, 0
          %s197 = scalar_lea.hbm %s2, %s194
          %s199 = sshll.u32 %s197, 4
          %s200 = int_to_ptr.hbm [resolvable:$true] %s199
          %s201 = sshll.u32 %s193, 4
          %s202 = int_to_ptr.vmem [resolvable:$true] %s201
          %204 = dma.hbm_to_vmem [thread:$0]  %s200, 32, %s202, %s190
        $region28: #{discriminator_forward.2} parent=19 // pred_fallthru
          _
      $region20: #{discriminator_forward.2} parent=5 // pred_fallthru
        _
      %p205 = scmp.le.s32.totalorder 1, %s15
      %p206 = scmp.lt.s32.totalorder %s15, 3
      %p207 = pnand %p205, %p206
      %p208 = pneg %p207
      // Predicated region
      $region29: #{discriminator_forward.2} parent=5 // pred_check
        _
      $region30: #{discriminator_forward.2} parent=5 // pred_check_branch
        %210 = sbr.rel (%p207) target = $region32
      $region31: #{discriminator_forward.2} parent=5 // pred_region
        %s211 = ssub.s32 %s15, 1
        %s212 = sand.u32 %s68, 1
        %s213 = scalar_lea.sflag [#allocation3], %s212
        %s214 = sand.u32 %s68, 1
        %s215 = smul.addr %s214, 2048
        %s216 = scalar_lea.vmem [#allocation2], %s215
        // Predicated region
        $region33: #{discriminator_forward.2} parent=31 // pred_check
          %p217 = pneg %p81
        $region34: #{discriminator_forward.2} parent=31 // pred_check_branch
          %219 = sbr.rel (%p217) target = $region36
        $region35: #{discriminator_forward.2} parent=31 // pred_region
          %221 = dma.done %s213, 32768
        $region36: #{discriminator_forward.2} parent=31 // pred_fallthru
          _
        %s222 = sand.u32 %s94, 1
        %s223 = scalar_lea.sflag [#allocation5], %s222
        %s224 = sand.u32 %s94, 1
        %s225 = smul.addr %s224, 2
        %s226 = scalar_lea.vmem [#allocation4], %s225
        // Predicated region
        $region37: #{discriminator_forward.2} parent=31 // pred_check
          %p227 = pneg %p107
        $region38: #{discriminator_forward.2} parent=31 // pred_check_branch
          %229 = sbr.rel (%p227) target = $region40
        $region39: #{discriminator_forward.2} parent=31 // pred_region
          %231 = dma.done %s223, 32
        $region40: #{discriminator_forward.2} parent=31 // pred_fallthru
          _
        %s232 = smul.u32 8, %s25
        %p233 = scmp.lt.s32.totalorder %s232, 7
        %s234 = scalar_select %p233, %s232, 7
        %s235 = smul.addr %s234, 8
        %s236 = scalar_lea.vmem %s0, %s235
        %p237 = pneg %p53
        %p238 = pneg %p50
        %s239 = sand.u32 %s68, 1
        %s240 = scalar_lea.sflag [#allocation3], %s239
        %s241 = sand.u32 %s68, 1
        %s242 = smul.addr %s241, 2048
        %s243 = scalar_lea.vmem [#allocation2], %s242
        %p244 = pneg %p81
        %p245 = pneg %p78
        %s246 = sand.u32 %s94, 1
        %s247 = scalar_lea.sflag [#allocation5], %s246
        %s248 = sand.u32 %s94, 1
        %s249 = smul.addr %s248, 2
        %s250 = scalar_lea.vmem [#allocation4], %s249
        %p251 = pneg %p107
        %p252 = pneg %p104
        %p253 = pneg %p133
        %p254 = pneg %p130
        %s255 = smul.u32 2, %s24
        %p256 = scmp.lt.s32.totalorder %s255, 3
        %s257 = scalar_select %p256, %s255, 3
        %s258 = smul.addr %s257, 8
        %s259 = scalar_lea.vmem %s3, %s258
        %s260 = smul.u32 8, %s25
        %p261 = scmp.lt.s32.totalorder %s260, 7
        %s262 = scalar_select %p261, %s260, 7
        %s263 = smul.addr %s262, 8
        %s264 = scalar_lea.vmem %s0, %s263
        %s265 = smul.u32 8, %s25
        %s266 = smul.u32 128, %s25
        %s267 = smul.u32 2, %s24
        %s268 = smul.u32 2, %s24
        %p269 = scmp.lt.s32.totalorder %s268, 3
        %s270 = scalar_select %p269, %s268, 3
        %s271 = smul.addr %s270, 8
        %s272 = scalar_lea.vmem %s3, %s271
        %s273 = smul.u32 2, %s24
        %p274 = scmp.eq.s32.totalorder %s25, 0
        // Predicated region
        $region41: #{discriminator_forward.2} parent=31 // pred_check
          %p275 = pneg %p274
        $region42: #{discriminator_forward.2} parent=31 // pred_check_branch
          %277 = sbr.rel (%p275) target = $region44
        $region43: #{discriminator_forward.2} parent=31 // pred_region
          %278 = vst [vmem:[%s272] sm:$0xff] 0.0
          %279 = vst [vmem:[%s272 + $0x8] sm:$0xff] 0.0
        $region44: #{discriminator_forward.2} parent=31 // pred_fallthru
          _
        %v280 = vld [vmem:[%s216] sm:$0xff]
        %v281 = vld [vmem:[%s216 + $0x8] sm:$0xff]
        %v282 = vld [vmem:[%s216 + $0x10] sm:$0xff]
        %v283 = vld [vmem:[%s216 + $0x18] sm:$0xff]
        %v284 = vld [vmem:[%s216 + $0x20] sm:$0xff]
        %v285 = vld [vmem:[%s216 + $0x28] sm:$0xff]
        %v286 = vld [vmem:[%s216 + $0x30] sm:$0xff]
        %v287 = vld [vmem:[%s216 + $0x38] sm:$0xff]
        %v288 = vld [vmem:[%s216 + $0x40] sm:$0xff]
        %v289 = vld [vmem:[%s216 + $0x48] sm:$0xff]
        %v290 = vld [vmem:[%s216 + $0x50] sm:$0xff]
        %v291 = vld [vmem:[%s216 + $0x58] sm:$0xff]
        %v292 = vld [vmem:[%s216 + $0x60] sm:$0xff]
        %v293 = vld [vmem:[%s216 + $0x68] sm:$0xff]
        %v294 = vld [vmem:[%s216 + $0x70] sm:$0xff]
        %v295 = vld [vmem:[%s216 + $0x78] sm:$0xff]
        %v296 = vld [vmem:[%s216 + $0x80] sm:$0xff]
        %v297 = vld [vmem:[%s216 + $0x88] sm:$0xff]
        %v298 = vld [vmem:[%s216 + $0x90] sm:$0xff]
        %v299 = vld [vmem:[%s216 + $0x98] sm:$0xff]
        %v300 = vld [vmem:[%s216 + $0xa0] sm:$0xff]
        %v301 = vld [vmem:[%s216 + $0xa8] sm:$0xff]
        %v302 = vld [vmem:[%s216 + $0xb0] sm:$0xff]
        %v303 = vld [vmem:[%s216 + $0xb8] sm:$0xff]
        %v304 = vld [vmem:[%s216 + $0xc0] sm:$0xff]
        %v305 = vld [vmem:[%s216 + $0xc8] sm:$0xff]
        %v306 = vld [vmem:[%s216 + $0xd0] sm:$0xff]
        %v307 = vld [vmem:[%s216 + $0xd8] sm:$0xff]
        %v308 = vld [vmem:[%s216 + $0xe0] sm:$0xff]
        %v309 = vld [vmem:[%s216 + $0xe8] sm:$0xff]
        %v310 = vld [vmem:[%s216 + $0xf0] sm:$0xff]
        %v311 = vld [vmem:[%s216 + $0xf8] sm:$0xff]
        %v312 = vld [vmem:[%s216 + $0x100] sm:$0xff]
        %v313 = vld [vmem:[%s216 + $0x108] sm:$0xff]
        %v314 = vld [vmem:[%s216 + $0x110] sm:$0xff]
        %v315 = vld [vmem:[%s216 + $0x118] sm:$0xff]
        %v316 = vld [vmem:[%s216 + $0x120] sm:$0xff]
        %v317 = vld [vmem:[%s216 + $0x128] sm:$0xff]
        %v318 = vld [vmem:[%s216 + $0x130] sm:$0xff]
        %v319 = vld [vmem:[%s216 + $0x138] sm:$0xff]
        %v320 = vld [vmem:[%s216 + $0x140] sm:$0xff]
        %v321 = vld [vmem:[%s216 + $0x148] sm:$0xff]
        %v322 = vld [vmem:[%s216 + $0x150] sm:$0xff]
        %v323 = vld [vmem:[%s216 + $0x158] sm:$0xff]
        %v324 = vld [vmem:[%s216 + $0x160] sm:$0xff]
        %v325 = vld [vmem:[%s216 + $0x168] sm:$0xff]
        %v326 = vld [vmem:[%s216 + $0x170] sm:$0xff]
        %v327 = vld [vmem:[%s216 + $0x178] sm:$0xff]
        %v328 = vld [vmem:[%s216 + $0x180] sm:$0xff]
        %v329 = vld [vmem:[%s216 + $0x188] sm:$0xff]
        %v330 = vld [vmem:[%s216 + $0x190] sm:$0xff]
        %v331 = vld [vmem:[%s216 + $0x198] sm:$0xff]
        %v332 = vld [vmem:[%s216 + $0x1a0] sm:$0xff]
        %v333 = vld [vmem:[%s216 + $0x1a8] sm:$0xff]
        %v334 = vld [vmem:[%s216 + $0x1b0] sm:$0xff]
        %v335 = vld [vmem:[%s216 + $0x1b8] sm:$0xff]
        %v336 = vld [vmem:[%s216 + $0x1c0] sm:$0xff]
        %v337 = vld [vmem:[%s216 + $0x1c8] sm:$0xff]
        %v338 = vld [vmem:[%s216 + $0x1d0] sm:$0xff]
        %v339 = vld [vmem:[%s216 + $0x1d8] sm:$0xff]
        %v340 = vld [vmem:[%s216 + $0x1e0] sm:$0xff]
        %v341 = vld [vmem:[%s216 + $0x1e8] sm:$0xff]
        %v342 = vld [vmem:[%s216 + $0x1f0] sm:$0xff]
        %v343 = vld [vmem:[%s216 + $0x1f8] sm:$0xff]
        %v344 = vld [vmem:[%s216 + $0x200] sm:$0xff]
        %v345 = vld [vmem:[%s216 + $0x208] sm:$0xff]
        %v346 = vld [vmem:[%s216 + $0x210] sm:$0xff]
        %v347 = vld [vmem:[%s216 + $0x218] sm:$0xff]
        %v348 = vld [vmem:[%s216 + $0x220] sm:$0xff]
        %v349 = vld [vmem:[%s216 + $0x228] sm:$0xff]
        %v350 = vld [vmem:[%s216 + $0x230] sm:$0xff]
        %v351 = vld [vmem:[%s216 + $0x238] sm:$0xff]
        %v352 = vld [vmem:[%s216 + $0x240] sm:$0xff]
        %v353 = vld [vmem:[%s216 + $0x248] sm:$0xff]
        %v354 = vld [vmem:[%s216 + $0x250] sm:$0xff]
        %v355 = vld [vmem:[%s216 + $0x258] sm:$0xff]
        %v356 = vld [vmem:[%s216 + $0x260] sm:$0xff]
        %v357 = vld [vmem:[%s216 + $0x268] sm:$0xff]
        %v358 = vld [vmem:[%s216 + $0x270] sm:$0xff]
        %v359 = vld [vmem:[%s216 + $0x278] sm:$0xff]
        %v360 = vld [vmem:[%s216 + $0x280] sm:$0xff]
        %v361 = vld [vmem:[%s216 + $0x288] sm:$0xff]
        %v362 = vld [vmem:[%s216 + $0x290] sm:$0xff]
        %v363 = vld [vmem:[%s216 + $0x298] sm:$0xff]
        %v364 = vld [vmem:[%s216 + $0x2a0] sm:$0xff]
        %v365 = vld [vmem:[%s216 + $0x2a8] sm:$0xff]
        %v366 = vld [vmem:[%s216 + $0x2b0] sm:$0xff]
        %v367 = vld [vmem:[%s216 + $0x2b8] sm:$0xff]
        %v368 = vld [vmem:[%s216 + $0x2c0] sm:$0xff]
        %v369 = vld [vmem:[%s216 + $0x2c8] sm:$0xff]
        %v370 = vld [vmem:[%s216 + $0x2d0] sm:$0xff]
        %v371 = vld [vmem:[%s216 + $0x2d8] sm:$0xff]
        %v372 = vld [vmem:[%s216 + $0x2e0] sm:$0xff]
        %v373 = vld [vmem:[%s216 + $0x2e8] sm:$0xff]
        %v374 = vld [vmem:[%s216 + $0x2f0] sm:$0xff]
        %v375 = vld [vmem:[%s216 + $0x2f8] sm:$0xff]
        %v376 = vld [vmem:[%s216 + $0x300] sm:$0xff]
        %v377 = vld [vmem:[%s216 + $0x308] sm:$0xff]
        %v378 = vld [vmem:[%s216 + $0x310] sm:$0xff]
        %v379 = vld [vmem:[%s216 + $0x318] sm:$0xff]
        %v380 = vld [vmem:[%s216 + $0x320] sm:$0xff]
        %v381 = vld [vmem:[%s216 + $0x328] sm:$0xff]
        %v382 = vld [vmem:[%s216 + $0x330] sm:$0xff]
        %v383 = vld [vmem:[%s216 + $0x338] sm:$0xff]
        %v384 = vld [vmem:[%s216 + $0x340] sm:$0xff]
        %v385 = vld [vmem:[%s216 + $0x348] sm:$0xff]
        %v386 = vld [vmem:[%s216 + $0x350] sm:$0xff]
        %v387 = vld [vmem:[%s216 + $0x358] sm:$0xff]
        %v388 = vld [vmem:[%s216 + $0x360] sm:$0xff]
        %v389 = vld [vmem:[%s216 + $0x368] sm:$0xff]
        %v390 = vld [vmem:[%s216 + $0x370] sm:$0xff]
        %v391 = vld [vmem:[%s216 + $0x378] sm:$0xff]
        %v392 = vld [vmem:[%s216 + $0x380] sm:$0xff]
        %v393 = vld [vmem:[%s216 + $0x388] sm:$0xff]
        %v394 = vld [vmem:[%s216 + $0x390] sm:$0xff]
        %v395 = vld [vmem:[%s216 + $0x398] sm:$0xff]
        %v396 = vld [vmem:[%s216 + $0x3a0] sm:$0xff]
        %v397 = vld [vmem:[%s216 + $0x3a8] sm:$0xff]
        %v398 = vld [vmem:[%s216 + $0x3b0] sm:$0xff]
        %v399 = vld [vmem:[%s216 + $0x3b8] sm:$0xff]
        %v400 = vld [vmem:[%s216 + $0x3c0] sm:$0xff]
        %v401 = vld [vmem:[%s216 + $0x3c8] sm:$0xff]
        %v402 = vld [vmem:[%s216 + $0x3d0] sm:$0xff]
        %v403 = vld [vmem:[%s216 + $0x3d8] sm:$0xff]
        %v404 = vld [vmem:[%s216 + $0x3e0] sm:$0xff]
        %v405 = vld [vmem:[%s216 + $0x3e8] sm:$0xff]
        %v406 = vld [vmem:[%s216 + $0x3f0] sm:$0xff]
        %v407 = vld [vmem:[%s216 + $0x3f8] sm:$0xff]
        %v408 = vld [vmem:[%s216 + $0x400] sm:$0xff]
        %v409 = vld [vmem:[%s216 + $0x408] sm:$0xff]
        %v410 = vld [vmem:[%s216 + $0x410] sm:$0xff]
        %v411 = vld [vmem:[%s216 + $0x418] sm:$0xff]
        %v412 = vld [vmem:[%s216 + $0x420] sm:$0xff]
        %v413 = vld [vmem:[%s216 + $0x428] sm:$0xff]
        %v414 = vld [vmem:[%s216 + $0x430] sm:$0xff]
        %v415 = vld [vmem:[%s216 + $0x438] sm:$0xff]
        %v416 = vld [vmem:[%s216 + $0x440] sm:$0xff]
        %v417 = vld [vmem:[%s216 + $0x448] sm:$0xff]
        %v418 = vld [vmem:[%s216 + $0x450] sm:$0xff]
        %v419 = vld [vmem:[%s216 + $0x458] sm:$0xff]
        %v420 = vld [vmem:[%s216 + $0x460] sm:$0xff]
        %v421 = vld [vmem:[%s216 + $0x468] sm:$0xff]
        %v422 = vld [vmem:[%s216 + $0x470] sm:$0xff]
        %v423 = vld [vmem:[%s216 + $0x478] sm:$0xff]
        %v424 = vld [vmem:[%s216 + $0x480] sm:$0xff]
        %v425 = vld [vmem:[%s216 + $0x488] sm:$0xff]
        %v426 = vld [vmem:[%s216 + $0x490] sm:$0xff]
        %v427 = vld [vmem:[%s216 + $0x498] sm:$0xff]
        %v428 = vld [vmem:[%s216 + $0x4a0] sm:$0xff]
        %v429 = vld [vmem:[%s216 + $0x4a8] sm:$0xff]
        %v430 = vld [vmem:[%s216 + $0x4b0] sm:$0xff]
        %v431 = vld [vmem:[%s216 + $0x4b8] sm:$0xff]
        %v432 = vld [vmem:[%s216 + $0x4c0] sm:$0xff]
        %v433 = vld [vmem:[%s216 + $0x4c8] sm:$0xff]
        %v434 = vld [vmem:[%s216 + $0x4d0] sm:$0xff]
        %v435 = vld [vmem:[%s216 + $0x4d8] sm:$0xff]
        %v436 = vld [vmem:[%s216 + $0x4e0] sm:$0xff]
        %v437 = vld [vmem:[%s216 + $0x4e8] sm:$0xff]
        %v438 = vld [vmem:[%s216 + $0x4f0] sm:$0xff]
        %v439 = vld [vmem:[%s216 + $0x4f8] sm:$0xff]
        %v440 = vld [vmem:[%s216 + $0x500] sm:$0xff]
        %v441 = vld [vmem:[%s216 + $0x508] sm:$0xff]
        %v442 = vld [vmem:[%s216 + $0x510] sm:$0xff]
        %v443 = vld [vmem:[%s216 + $0x518] sm:$0xff]
        %v444 = vld [vmem:[%s216 + $0x520] sm:$0xff]
        %v445 = vld [vmem:[%s216 + $0x528] sm:$0xff]
        %v446 = vld [vmem:[%s216 + $0x530] sm:$0xff]
        %v447 = vld [vmem:[%s216 + $0x538] sm:$0xff]
        %v448 = vld [vmem:[%s216 + $0x540] sm:$0xff]
        %v449 = vld [vmem:[%s216 + $0x548] sm:$0xff]
        %v450 = vld [vmem:[%s216 + $0x550] sm:$0xff]
        %v451 = vld [vmem:[%s216 + $0x558] sm:$0xff]
        %v452 = vld [vmem:[%s216 + $0x560] sm:$0xff]
        %v453 = vld [vmem:[%s216 + $0x568] sm:$0xff]
        %v454 = vld [vmem:[%s216 + $0x570] sm:$0xff]
        %v455 = vld [vmem:[%s216 + $0x578] sm:$0xff]
        %v456 = vld [vmem:[%s216 + $0x580] sm:$0xff]
        %v457 = vld [vmem:[%s216 + $0x588] sm:$0xff]
        %v458 = vld [vmem:[%s216 + $0x590] sm:$0xff]
        %v459 = vld [vmem:[%s216 + $0x598] sm:$0xff]
        %v460 = vld [vmem:[%s216 + $0x5a0] sm:$0xff]
        %v461 = vld [vmem:[%s216 + $0x5a8] sm:$0xff]
        %v462 = vld [vmem:[%s216 + $0x5b0] sm:$0xff]
        %v463 = vld [vmem:[%s216 + $0x5b8] sm:$0xff]
        %v464 = vld [vmem:[%s216 + $0x5c0] sm:$0xff]
        %v465 = vld [vmem:[%s216 + $0x5c8] sm:$0xff]
        %v466 = vld [vmem:[%s216 + $0x5d0] sm:$0xff]
        %v467 = vld [vmem:[%s216 + $0x5d8] sm:$0xff]
        %v468 = vld [vmem:[%s216 + $0x5e0] sm:$0xff]
        %v469 = vld [vmem:[%s216 + $0x5e8] sm:$0xff]
        %v470 = vld [vmem:[%s216 + $0x5f0] sm:$0xff]
        %v471 = vld [vmem:[%s216 + $0x5f8] sm:$0xff]
        %v472 = vld [vmem:[%s216 + $0x600] sm:$0xff]
        %v473 = vld [vmem:[%s216 + $0x608] sm:$0xff]
        %v474 = vld [vmem:[%s216 + $0x610] sm:$0xff]
        %v475 = vld [vmem:[%s216 + $0x618] sm:$0xff]
        %v476 = vld [vmem:[%s216 + $0x620] sm:$0xff]
        %v477 = vld [vmem:[%s216 + $0x628] sm:$0xff]
        %v478 = vld [vmem:[%s216 + $0x630] sm:$0xff]
        %v479 = vld [vmem:[%s216 + $0x638] sm:$0xff]
        %v480 = vld [vmem:[%s216 + $0x640] sm:$0xff]
        %v481 = vld [vmem:[%s216 + $0x648] sm:$0xff]
        %v482 = vld [vmem:[%s216 + $0x650] sm:$0xff]
        %v483 = vld [vmem:[%s216 + $0x658] sm:$0xff]
        %v484 = vld [vmem:[%s216 + $0x660] sm:$0xff]
        %v485 = vld [vmem:[%s216 + $0x668] sm:$0xff]
        %v486 = vld [vmem:[%s216 + $0x670] sm:$0xff]
        %v487 = vld [vmem:[%s216 + $0x678] sm:$0xff]
        %v488 = vld [vmem:[%s216 + $0x680] sm:$0xff]
        %v489 = vld [vmem:[%s216 + $0x688] sm:$0xff]
        %v490 = vld [vmem:[%s216 + $0x690] sm:$0xff]
        %v491 = vld [vmem:[%s216 + $0x698] sm:$0xff]
        %v492 = vld [vmem:[%s216 + $0x6a0] sm:$0xff]
        %v493 = vld [vmem:[%s216 + $0x6a8] sm:$0xff]
        %v494 = vld [vmem:[%s216 + $0x6b0] sm:$0xff]
        %v495 = vld [vmem:[%s216 + $0x6b8] sm:$0xff]
        %v496 = vld [vmem:[%s216 + $0x6c0] sm:$0xff]
        %v497 = vld [vmem:[%s216 + $0x6c8] sm:$0xff]
        %v498 = vld [vmem:[%s216 + $0x6d0] sm:$0xff]
        %v499 = vld [vmem:[%s216 + $0x6d8] sm:$0xff]
        %v500 = vld [vmem:[%s216 + $0x6e0] sm:$0xff]
        %v501 = vld [vmem:[%s216 + $0x6e8] sm:$0xff]
        %v502 = vld [vmem:[%s216 + $0x6f0] sm:$0xff]
        %v503 = vld [vmem:[%s216 + $0x6f8] sm:$0xff]
        %v504 = vld [vmem:[%s216 + $0x700] sm:$0xff]
        %v505 = vld [vmem:[%s216 + $0x708] sm:$0xff]
        %v506 = vld [vmem:[%s216 + $0x710] sm:$0xff]
        %v507 = vld [vmem:[%s216 + $0x718] sm:$0xff]
        %v508 = vld [vmem:[%s216 + $0x720] sm:$0xff]
        %v509 = vld [vmem:[%s216 + $0x728] sm:$0xff]
        %v510 = vld [vmem:[%s216 + $0x730] sm:$0xff]
        %v511 = vld [vmem:[%s216 + $0x738] sm:$0xff]
        %v512 = vld [vmem:[%s216 + $0x740] sm:$0xff]
        %v513 = vld [vmem:[%s216 + $0x748] sm:$0xff]
        %v514 = vld [vmem:[%s216 + $0x750] sm:$0xff]
        %v515 = vld [vmem:[%s216 + $0x758] sm:$0xff]
        %v516 = vld [vmem:[%s216 + $0x760] sm:$0xff]
        %v517 = vld [vmem:[%s216 + $0x768] sm:$0xff]
        %v518 = vld [vmem:[%s216 + $0x770] sm:$0xff]
        %v519 = vld [vmem:[%s216 + $0x778] sm:$0xff]
        %v520 = vld [vmem:[%s216 + $0x780] sm:$0xff]
        %v521 = vld [vmem:[%s216 + $0x788] sm:$0xff]
        %v522 = vld [vmem:[%s216 + $0x790] sm:$0xff]
        %v523 = vld [vmem:[%s216 + $0x798] sm:$0xff]
        %v524 = vld [vmem:[%s216 + $0x7a0] sm:$0xff]
        %v525 = vld [vmem:[%s216 + $0x7a8] sm:$0xff]
        %v526 = vld [vmem:[%s216 + $0x7b0] sm:$0xff]
        %v527 = vld [vmem:[%s216 + $0x7b8] sm:$0xff]
        %v528 = vld [vmem:[%s216 + $0x7c0] sm:$0xff]
        %v529 = vld [vmem:[%s216 + $0x7c8] sm:$0xff]
        %v530 = vld [vmem:[%s216 + $0x7d0] sm:$0xff]
        %v531 = vld [vmem:[%s216 + $0x7d8] sm:$0xff]
        %v532 = vld [vmem:[%s216 + $0x7e0] sm:$0xff]
        %v533 = vld [vmem:[%s216 + $0x7e8] sm:$0xff]
        %v534 = vld [vmem:[%s216 + $0x7f0] sm:$0xff]
        %v535 = vld [vmem:[%s216 + $0x7f8] sm:$0xff]
        %v536 = vld [vmem:[%s264] sm:$0xff]
        %v537 = vld [vmem:[%s264 + $0x8] sm:$0xff]
        %v538 = vld [vmem:[%s264 + $0x10] sm:$0xff]
        %v539 = vld [vmem:[%s264 + $0x18] sm:$0xff]
        %v540 = vld [vmem:[%s264 + $0x20] sm:$0xff]
        %v541 = vld [vmem:[%s264 + $0x28] sm:$0xff]
        %v542 = vld [vmem:[%s264 + $0x30] sm:$0xff]
        %v543 = vld [vmem:[%s264 + $0x38] sm:$0xff]
        %v544 = vld [vmem:[%s272] sm:$0xff]
        %v545 = vld [vmem:[%s272 + $0x8] sm:$0xff]
        %546 = vmatpush.msra.mxu0 %v310
        %547 = vmatpush.msra.mxu0 %v308
        %548 = vmatpush.msra.mxu0 %v306
        %549 = vmatpush.msra.mxu0 %v304
        %550 = vmatpush.msra.mxu0 %v302
        %551 = vmatpush.msra.mxu0 %v300
        %552 = vmatpush.msra.mxu0 %v298
        %553 = vmatpush.msra.mxu0 %v296
        %554 = vmatpush.msra.mxu0 %v294
        %555 = vmatpush.msra.mxu0 %v292
        %556 = vmatpush.msra.mxu0 %v290
        %557 = vmatpush.msra.mxu0 %v288
        %558 = vmatpush.msra.mxu0 %v286
        %559 = vmatpush.msra.mxu0 %v284
        %560 = vmatpush.msra.mxu0 %v282
        %561 = vmatpush.msra.mxu0 %v280
        %562 = vmatmul.f32.gmra.mxu0 %v536
        %v563 = vpop.f32.mrf.mxu0
        %v564 = vadd.f32 0.0, %v563
        %565 = vdwg.mxu0
        %566 = vmatpush.msra.mxu0 %v342
        %567 = vmatpush.msra.mxu0 %v340
        %568 = vmatpush.msra.mxu0 %v338
        %569 = vmatpush.msra.mxu0 %v336
        %570 = vmatpush.msra.mxu0 %v334
        %571 = vmatpush.msra.mxu0 %v332
        %572 = vmatpush.msra.mxu0 %v330
        %573 = vmatpush.msra.mxu0 %v328
        %574 = vmatpush.msra.mxu0 %v326
        %575 = vmatpush.msra.mxu0 %v324
        %576 = vmatpush.msra.mxu0 %v322
        %577 = vmatpush.msra.mxu0 %v320
        %578 = vmatpush.msra.mxu0 %v318
        %579 = vmatpush.msra.mxu0 %v316
        %580 = vmatpush.msra.mxu0 %v314
        %581 = vmatpush.msra.mxu0 %v312
        %582 = vmatmul.f32.gmra.mxu0 %v537
        %v583 = vpop.f32.mrf.mxu0
        %v584 = vadd.f32 %v564, %v583
        %585 = vdwg.mxu0
        %586 = vmatpush.msra.mxu0 %v374
        %587 = vmatpush.msra.mxu0 %v372
        %588 = vmatpush.msra.mxu0 %v370
        %589 = vmatpush.msra.mxu0 %v368
        %590 = vmatpush.msra.mxu0 %v366
        %591 = vmatpush.msra.mxu0 %v364
        %592 = vmatpush.msra.mxu0 %v362
        %593 = vmatpush.msra.mxu0 %v360
        %594 = vmatpush.msra.mxu0 %v358
        %595 = vmatpush.msra.mxu0 %v356
        %596 = vmatpush.msra.mxu0 %v354
        %597 = vmatpush.msra.mxu0 %v352
        %598 = vmatpush.msra.mxu0 %v350
        %599 = vmatpush.msra.mxu0 %v348
        %600 = vmatpush.msra.mxu0 %v346
        %601 = vmatpush.msra.mxu0 %v344
        %602 = vmatmul.f32.gmra.mxu0 %v538
        %v603 = vpop.f32.mrf.mxu0
        %v604 = vadd.f32 %v584, %v603
        %605 = vdwg.mxu0
        %606 = vmatpush.msra.mxu0 %v406
        %607 = vmatpush.msra.mxu0 %v404
        %608 = vmatpush.msra.mxu0 %v402
        %609 = vmatpush.msra.mxu0 %v400
        %610 = vmatpush.msra.mxu0 %v398
        %611 = vmatpush.msra.mxu0 %v396
        %612 = vmatpush.msra.mxu0 %v394
        %613 = vmatpush.msra.mxu0 %v392
        %614 = vmatpush.msra.mxu0 %v390
        %615 = vmatpush.msra.mxu0 %v388
        %616 = vmatpush.msra.mxu0 %v386
        %617 = vmatpush.msra.mxu0 %v384
        %618 = vmatpush.msra.mxu0 %v382
        %619 = vmatpush.msra.mxu0 %v380
        %620 = vmatpush.msra.mxu0 %v378
        %621 = vmatpush.msra.mxu0 %v376
        %622 = vmatmul.f32.gmra.mxu0 %v539
        %v623 = vpop.f32.mrf.mxu0
        %v624 = vadd.f32 %v604, %v623
        %625 = vdwg.mxu0
        %626 = vmatpush.msra.mxu0 %v438
        %627 = vmatpush.msra.mxu0 %v436
        %628 = vmatpush.msra.mxu0 %v434
        %629 = vmatpush.msra.mxu0 %v432
        %630 = vmatpush.msra.mxu0 %v430
        %631 = vmatpush.msra.mxu0 %v428
        %632 = vmatpush.msra.mxu0 %v426
        %633 = vmatpush.msra.mxu0 %v424
        %634 = vmatpush.msra.mxu0 %v422
        %635 = vmatpush.msra.mxu0 %v420
        %636 = vmatpush.msra.mxu0 %v418
        %637 = vmatpush.msra.mxu0 %v416
        %638 = vmatpush.msra.mxu0 %v414
        %639 = vmatpush.msra.mxu0 %v412
        %640 = vmatpush.msra.mxu0 %v410
        %641 = vmatpush.msra.mxu0 %v408
        %642 = vmatmul.f32.gmra.mxu0 %v540
        %v643 = vpop.f32.mrf.mxu0
        %v644 = vadd.f32 %v624, %v643
        %645 = vdwg.mxu0
        %646 = vmatpush.msra.mxu0 %v470
        %647 = vmatpush.msra.mxu0 %v468
        %648 = vmatpush.msra.mxu0 %v466
        %649 = vmatpush.msra.mxu0 %v464
        %650 = vmatpush.msra.mxu0 %v462
        %651 = vmatpush.msra.mxu0 %v460
        %652 = vmatpush.msra.mxu0 %v458
        %653 = vmatpush.msra.mxu0 %v456
        %654 = vmatpush.msra.mxu0 %v454
        %655 = vmatpush.msra.mxu0 %v452
        %656 = vmatpush.msra.mxu0 %v450
        %657 = vmatpush.msra.mxu0 %v448
        %658 = vmatpush.msra.mxu0 %v446
        %659 = vmatpush.msra.mxu0 %v444
        %660 = vmatpush.msra.mxu0 %v442
        %661 = vmatpush.msra.mxu0 %v440
        %662 = vmatmul.f32.gmra.mxu0 %v541
        %v663 = vpop.f32.mrf.mxu0
        %v664 = vadd.f32 %v644, %v663
        %665 = vdwg.mxu0
        %666 = vmatpush.msra.mxu0 %v502
        %667 = vmatpush.msra.mxu0 %v500
        %668 = vmatpush.msra.mxu0 %v498
        %669 = vmatpush.msra.mxu0 %v496
        %670 = vmatpush.msra.mxu0 %v494
        %671 = vmatpush.msra.mxu0 %v492
        %672 = vmatpush.msra.mxu0 %v490
        %673 = vmatpush.msra.mxu0 %v488
        %674 = vmatpush.msra.mxu0 %v486
        %675 = vmatpush.msra.mxu0 %v484
        %676 = vmatpush.msra.mxu0 %v482
        %677 = vmatpush.msra.mxu0 %v480
        %678 = vmatpush.msra.mxu0 %v478
        %679 = vmatpush.msra.mxu0 %v476
        %680 = vmatpush.msra.mxu0 %v474
        %681 = vmatpush.msra.mxu0 %v472
        %682 = vmatmul.f32.gmra.mxu0 %v542
        %v683 = vpop.f32.mrf.mxu0
        %v684 = vadd.f32 %v664, %v683
        %685 = vdwg.mxu0
        %686 = vmatpush.msra.mxu0 %v534
        %687 = vmatpush.msra.mxu0 %v532
        %688 = vmatpush.msra.mxu0 %v530
        %689 = vmatpush.msra.mxu0 %v528
        %690 = vmatpush.msra.mxu0 %v526
        %691 = vmatpush.msra.mxu0 %v524
        %692 = vmatpush.msra.mxu0 %v522
        %693 = vmatpush.msra.mxu0 %v520
        %694 = vmatpush.msra.mxu0 %v518
        %695 = vmatpush.msra.mxu0 %v516
        %696 = vmatpush.msra.mxu0 %v514
        %697 = vmatpush.msra.mxu0 %v512
        %698 = vmatpush.msra.mxu0 %v510
        %699 = vmatpush.msra.mxu0 %v508
        %700 = vmatpush.msra.mxu0 %v506
        %701 = vmatpush.msra.mxu0 %v504
        %702 = vmatmul.f32.gmra.mxu0 %v543
        %v703 = vpop.f32.mrf.mxu0
        %v704 = vadd.f32 %v684, %v703
        %705 = vdwg.mxu0
        %706 = vmatpush.msra.mxu0 %v311
        %707 = vmatpush.msra.mxu0 %v309
        %708 = vmatpush.msra.mxu0 %v307
        %709 = vmatpush.msra.mxu0 %v305
        %710 = vmatpush.msra.mxu0 %v303
        %711 = vmatpush.msra.mxu0 %v301
        %712 = vmatpush.msra.mxu0 %v299
        %713 = vmatpush.msra.mxu0 %v297
        %714 = vmatpush.msra.mxu0 %v295
        %715 = vmatpush.msra.mxu0 %v293
        %716 = vmatpush.msra.mxu0 %v291
        %717 = vmatpush.msra.mxu0 %v289
        %718 = vmatpush.msra.mxu0 %v287
        %719 = vmatpush.msra.mxu0 %v285
        %720 = vmatpush.msra.mxu0 %v283
        %721 = vmatpush.msra.mxu0 %v281
        %722 = vmatmul.f32.gmra.mxu0 %v536
        %v723 = vpop.f32.mrf.mxu0
        %v724 = vadd.f32 0.0, %v723
        %725 = vdwg.mxu0
        %726 = vmatpush.msra.mxu0 %v343
        %727 = vmatpush.msra.mxu0 %v341
        %728 = vmatpush.msra.mxu0 %v339
        %729 = vmatpush.msra.mxu0 %v337
        %730 = vmatpush.msra.mxu0 %v335
        %731 = vmatpush.msra.mxu0 %v333
        %732 = vmatpush.msra.mxu0 %v331
        %733 = vmatpush.msra.mxu0 %v329
        %734 = vmatpush.msra.mxu0 %v327
        %735 = vmatpush.msra.mxu0 %v325
        %736 = vmatpush.msra.mxu0 %v323
        %737 = vmatpush.msra.mxu0 %v321
        %738 = vmatpush.msra.mxu0 %v319
        %739 = vmatpush.msra.mxu0 %v317
        %740 = vmatpush.msra.mxu0 %v315
        %741 = vmatpush.msra.mxu0 %v313
        %742 = vmatmul.f32.gmra.mxu0 %v537
        %v743 = vpop.f32.mrf.mxu0
        %v744 = vadd.f32 %v724, %v743
        %745 = vdwg.mxu0
        %746 = vmatpush.msra.mxu0 %v375
        %747 = vmatpush.msra.mxu0 %v373
        %748 = vmatpush.msra.mxu0 %v371
        %749 = vmatpush.msra.mxu0 %v369
        %750 = vmatpush.msra.mxu0 %v367
        %751 = vmatpush.msra.mxu0 %v365
        %752 = vmatpush.msra.mxu0 %v363
        %753 = vmatpush.msra.mxu0 %v361
        %754 = vmatpush.msra.mxu0 %v359
        %755 = vmatpush.msra.mxu0 %v357
        %756 = vmatpush.msra.mxu0 %v355
        %757 = vmatpush.msra.mxu0 %v353
        %758 = vmatpush.msra.mxu0 %v351
        %759 = vmatpush.msra.mxu0 %v349
        %760 = vmatpush.msra.mxu0 %v347
        %761 = vmatpush.msra.mxu0 %v345
        %762 = vmatmul.f32.gmra.mxu0 %v538
        %v763 = vpop.f32.mrf.mxu0
        %v764 = vadd.f32 %v744, %v763
        %765 = vdwg.mxu0
        %766 = vmatpush.msra.mxu0 %v407
        %767 = vmatpush.msra.mxu0 %v405
        %768 = vmatpush.msra.mxu0 %v403
        %769 = vmatpush.msra.mxu0 %v401
        %770 = vmatpush.msra.mxu0 %v399
        %771 = vmatpush.msra.mxu0 %v397
        %772 = vmatpush.msra.mxu0 %v395
        %773 = vmatpush.msra.mxu0 %v393
        %774 = vmatpush.msra.mxu0 %v391
        %775 = vmatpush.msra.mxu0 %v389
        %776 = vmatpush.msra.mxu0 %v387
        %777 = vmatpush.msra.mxu0 %v385
        %778 = vmatpush.msra.mxu0 %v383
        %779 = vmatpush.msra.mxu0 %v381
        %780 = vmatpush.msra.mxu0 %v379
        %781 = vmatpush.msra.mxu0 %v377
        %782 = vmatmul.f32.gmra.mxu0 %v539
        %v783 = vpop.f32.mrf.mxu0
        %v784 = vadd.f32 %v764, %v783
        %785 = vdwg.mxu0
        %786 = vmatpush.msra.mxu0 %v439
        %787 = vmatpush.msra.mxu0 %v437
        %788 = vmatpush.msra.mxu0 %v435
        %789 = vmatpush.msra.mxu0 %v433
        %790 = vmatpush.msra.mxu0 %v431
        %791 = vmatpush.msra.mxu0 %v429
        %792 = vmatpush.msra.mxu0 %v427
        %793 = vmatpush.msra.mxu0 %v425
        %794 = vmatpush.msra.mxu0 %v423
        %795 = vmatpush.msra.mxu0 %v421
        %796 = vmatpush.msra.mxu0 %v419
        %797 = vmatpush.msra.mxu0 %v417
        %798 = vmatpush.msra.mxu0 %v415
        %799 = vmatpush.msra.mxu0 %v413
        %800 = vmatpush.msra.mxu0 %v411
        %801 = vmatpush.msra.mxu0 %v409
        %802 = vmatmul.f32.gmra.mxu0 %v540
        %v803 = vpop.f32.mrf.mxu0
        %v804 = vadd.f32 %v784, %v803
        %805 = vdwg.mxu0
        %806 = vmatpush.msra.mxu0 %v471
        %807 = vmatpush.msra.mxu0 %v469
        %808 = vmatpush.msra.mxu0 %v467
        %809 = vmatpush.msra.mxu0 %v465
        %810 = vmatpush.msra.mxu0 %v463
        %811 = vmatpush.msra.mxu0 %v461
        %812 = vmatpush.msra.mxu0 %v459
        %813 = vmatpush.msra.mxu0 %v457
        %814 = vmatpush.msra.mxu0 %v455
        %815 = vmatpush.msra.mxu0 %v453
        %816 = vmatpush.msra.mxu0 %v451
        %817 = vmatpush.msra.mxu0 %v449
        %818 = vmatpush.msra.mxu0 %v447
        %819 = vmatpush.msra.mxu0 %v445
        %820 = vmatpush.msra.mxu0 %v443
        %821 = vmatpush.msra.mxu0 %v441
        %822 = vmatmul.f32.gmra.mxu0 %v541
        %v823 = vpop.f32.mrf.mxu0
        %v824 = vadd.f32 %v804, %v823
        %825 = vdwg.mxu0
        %826 = vmatpush.msra.mxu0 %v503
        %827 = vmatpush.msra.mxu0 %v501
        %828 = vmatpush.msra.mxu0 %v499
        %829 = vmatpush.msra.mxu0 %v497
        %830 = vmatpush.msra.mxu0 %v495
        %831 = vmatpush.msra.mxu0 %v493
        %832 = vmatpush.msra.mxu0 %v491
        %833 = vmatpush.msra.mxu0 %v489
        %834 = vmatpush.msra.mxu0 %v487
        %835 = vmatpush.msra.mxu0 %v485
        %836 = vmatpush.msra.mxu0 %v483
        %837 = vmatpush.msra.mxu0 %v481
        %838 = vmatpush.msra.mxu0 %v479
        %839 = vmatpush.msra.mxu0 %v477
        %840 = vmatpush.msra.mxu0 %v475
        %841 = vmatpush.msra.mxu0 %v473
        %842 = vmatmul.f32.gmra.mxu0 %v542
        %v843 = vpop.f32.mrf.mxu0
        %v844 = vadd.f32 %v824, %v843
        %845 = vdwg.mxu0
        %846 = vmatpush.msra.mxu0 %v535
        %847 = vmatpush.msra.mxu0 %v533
        %848 = vmatpush.msra.mxu0 %v531
        %849 = vmatpush.msra.mxu0 %v529
        %850 = vmatpush.msra.mxu0 %v527
        %851 = vmatpush.msra.mxu0 %v525
        %852 = vmatpush.msra.mxu0 %v523
        %853 = vmatpush.msra.mxu0 %v521
        %854 = vmatpush.msra.mxu0 %v519
        %855 = vmatpush.msra.mxu0 %v517
        %856 = vmatpush.msra.mxu0 %v515
        %857 = vmatpush.msra.mxu0 %v513
        %858 = vmatpush.msra.mxu0 %v511
        %859 = vmatpush.msra.mxu0 %v509
        %860 = vmatpush.msra.mxu0 %v507
        %861 = vmatpush.msra.mxu0 %v505
        %862 = vmatmul.f32.gmra.mxu0 %v543
        %v863 = vpop.f32.mrf.mxu0
        %v864 = vadd.f32 %v844, %v863
        %865 = vdwg.mxu0
        %v866 = vadd.f32 %v544, %v704
        %v867 = vadd.f32 %v545, %v864
        %868 = vst [vmem:[%s272] sm:$0xff] %v866
        %869 = vst [vmem:[%s272 + $0x8] sm:$0xff] %v867
        // Predicated region
        $region45: #{discriminator_forward.2} parent=31 // pred_check
          %p870 = pneg %p274
        $region46: #{discriminator_forward.2} parent=31 // pred_check_branch
          %872 = sbr.rel (%p870) target = $region48
        $region47: #{discriminator_forward.2} parent=31 // pred_region
          %v873 = vld [vmem:[%s272] sm:$0xff]
          %v874 = vld [vmem:[%s272 + $0x8] sm:$0xff]
          %v875 = vld [vmem:[%s226] sm:$0x3]
          %v877 = vperm.slane %v875, 0
          %v878 = vperm.slane %v875, 1
          %v881 = vadd.f32 %v873, %v877
          %v882 = vadd.f32 %v874, %v878
          %vm883 = vcmp.ge.f32.partialorder %v881, 0.0
          %vm884 = vcmp.ge.f32.partialorder %v882, 0.0
          %v885 = vmul.f32 %v881, 0.2
          %v886 = vmul.f32 %v882, 0.2
          %v887 = vsel %vm883, %v881, %v885
          %v888 = vsel %vm884, %v882, %v886
          %889 = vst [vmem:[%s272] sm:$0xff] %v887
          %890 = vst [vmem:[%s272 + $0x8] sm:$0xff] %v888
        $region48: #{discriminator_forward.2} parent=31 // pred_fallthru
          _
        %s891 = smul.u32 2, %s24
        %p892 = scmp.lt.s32.totalorder %s891, 3
        %s893 = scalar_select %p892, %s891, 3
        %s894 = smul.addr %s893, 8
        %s895 = scalar_lea.vmem %s3, %s894
        // Predicated region
        $region49: #{discriminator_forward.2} parent=31 // pred_check
          %p896 = pneg %p130
        $region50: #{discriminator_forward.2} parent=31 // pred_check_branch
          %898 = sbr.rel (%p896) target = $region52
        $region51: #{discriminator_forward.2} parent=31 // pred_region
          %s899 = smul.u32 2, %s24
        $region52: #{discriminator_forward.2} parent=31 // pred_fallthru
          _
      $region32: #{discriminator_forward.2} parent=5 // pred_fallthru
        _
      %p900 = scmp.le.s32.totalorder 2, %s15
      // Predicated region
      $region53: #{discriminator_forward.2} parent=5 // pred_check
        %p901 = pneg %p900
      $region54: #{discriminator_forward.2} parent=5 // pred_check_branch
        %903 = sbr.rel (%p901) target = $region56
      $region55: #{discriminator_forward.2} parent=5 // pred_region
        %s904 = ssub.s32 %s15, 2
        // Predicated region
        $region57: #{discriminator_forward.2} parent=55 // pred_check
          %p905 = pneg %p136
        $region58: #{discriminator_forward.2} parent=55 // pred_check_branch
          %907 = sbr.rel (%p905) target = $region60
        $region59: #{discriminator_forward.2} parent=55 // pred_region
          %s908 = smul.u32 2, %s26
          %p909 = scmp.lt.s32.totalorder %s908, 3
          %s910 = scalar_select %p909, %s908, 3
          %s911 = smul.addr %s910, 8
          %s912 = scalar_lea.vmem %s3, %s911
        $region60: #{discriminator_forward.2} parent=55 // pred_fallthru
          _
      $region56: #{discriminator_forward.2} parent=5 // pred_fallthru
        _
    $region6: #{discriminator_forward.2} parent=1 // loop_footer
      %s19 = sadd.s32 1, %s15
    $region7: #{discriminator_forward.2} parent=1 // loop_footer_branch
      %14 = sbr.rel target = $region3
    $region8: #{discriminator_forward.2} parent=1 // loop_exit
      _
    %913 = vsyncpa [#allocation3], 1
    %s914 = scalar_lea.sflag [#allocation3], 1
    %915 = vsyncpa %s914, 1
    %916 = vsyncpa [#allocation5], 1
    %s917 = scalar_lea.sflag [#allocation5], 1
    %918 = vsyncpa %s917, 1

</llo_original>
